<compile_context>
chip_gen: v5e
topology: v5e:2x2
jax: 0.10.0
libtpu: 0.0.40
codegen_flags: <defaults>
</compile_context>

<pallas_src>
import math

import jax
import jax.numpy as jnp
from jax import lax
from jax.experimental import pallas as pl
from jax.experimental.pallas import tpu as pltpu


def _iqn_kernel(xat_ref,
                w1_ref, b1_ref, w2_ref, b2_ref,
                we_ref, be_ref, wf_ref,
                quant_ref):
    """One grid step == one batch tile of TB rows.

    xat_ref   : (TB, D+N) f32   concat(obs, action, taus) rows
    w1/b1     : (D, H) bf16, (1, H) f32   encoder layer 1
    w2/b2     : (H, H) bf16, (1, H) f32   encoder layer 2
    we/be     : (E, H) bf16, (1, H) f32   tau embedding (nn.Linear(embed, hidden))
    wf        : (1, H) f32                final fc weight row (bias added outside)
    quant_ref : (TB, N) f32   output quantiles (before final-fc bias)
    """
    D = w1_ref.shape[0]
    E, H = we_ref.shape
    N = quant_ref.shape[1]

    xat = xat_ref[...]                                   # single (TB, D+N) load
    xa = xat[:, :D].astype(jnp.bfloat16)                 # (TB, D)
    taus = xat[:, D:]                                    # (TB, N) f32

    # ---- encoder: VectorEncoderWithAction (2-layer MLP + ReLU), bf16 MXU ----
    h = jnp.dot(xa, w1_ref[...], preferred_element_type=jnp.float32) + b1_ref[...]
    h = jnp.maximum(h, 0.0)                              # (TB, H) f32
    h = jnp.dot(h.astype(jnp.bfloat16), w2_ref[...],
                preferred_element_type=jnp.float32) + b2_ref[...]
    h = jnp.maximum(h, 0.0)                              # (TB, H) f32

    # Fold the final fc weight row into h once (VPU), so the per-quantile
    # contraction is just multiply + lane reduce.
    hw = h * wf_ref[...]                                 # (TB, H) f32

    # pi * (arange(E) + 1), generated in-kernel (no DMA).
    steps = (lax.broadcasted_iota(jnp.int32, (1, E), 1) + 1).astype(jnp.float32)
    steps = steps * jnp.float32(math.pi)                 # (1, E)

    # ---- compute_iqn_feature + final fc, one quantile per (unrolled) chunk ----
    for n in range(N):                                   # static unroll, tiny temps
        tau_n = taus[:, n:n + 1]                         # (TB, 1) f32
        prior_n = jnp.cos(tau_n * steps)                 # (TB, E) f32 (cos arg in f32)
        phi_n = jnp.dot(prior_n.astype(jnp.bfloat16), we_ref[...],
                        preferred_element_type=jnp.float32) + be_ref[...]
        phi_n = jnp.maximum(phi_n, 0.0)                  # (TB, H) f32
        q_n = jnp.sum(hw * phi_n, axis=-1, keepdims=True)  # (TB, 1)
        quant_ref[:, n:n + 1] = q_n


def _round_up(x, m):
    return ((x + m - 1) // m) * m


def iqn_q_function(x, action, taus, params, *, batch_tile=512):
    """Pallas-backed forward pass. Returns (q_value, quantiles, taus)."""
    B = x.shape[0]
    N = taus.shape[1]
    xa = jnp.concatenate([x, action], axis=-1).astype(jnp.float32)      # (B, D)
    D = xa.shape[-1]
    H = params["w1"].shape[1]
    E = params["we"].shape[0]

    # Merge activations and taus into one DMA stream per grid step.
    xat = jnp.concatenate([xa, taus.astype(jnp.float32)], axis=-1)      # (B, D+N)

    # Grid / tile selection: keep padding small (TB = round_up(ceil(B/G), 8))
    # and use >= 2 grid steps whenever possible so both v7x TCs get work
    # (harmless on single-TC v5e/v6e).
    G = max(1, -(-B // batch_tile))
    if G == 1 and B > 8:
        G = 2
    TB = _round_up(-(-B // G), 8)
    Bp = G * TB
    if Bp != B:
        xat = jnp.pad(xat, ((0, Bp - B), (0, 0)))

    # bf16 weights for the MXU (halves weight DMA too); biases stay f32.
    w1 = params["w1"].astype(jnp.bfloat16)
    w2 = params["w2"].astype(jnp.bfloat16)
    we = params["we"].astype(jnp.bfloat16)
    wf_row = params["wf"].reshape(1, H).astype(jnp.float32)             # (H,1)->(1,H)

    def rep(shape):
        # full-array block (block_shape == array shape), resident across the grid
        return pl.BlockSpec(shape, lambda b: (0,) * len(shape))

    quantiles_p = pl.pallas_call(
        _iqn_kernel,
        out_shape=jax.ShapeDtypeStruct((Bp, N), jnp.float32),
        grid=(G,),
        in_specs=[
            pl.BlockSpec((TB, D + N), lambda b: (b, 0)),  # obs+action+taus tile
            rep((D, H)), rep((1, H)),                     # encoder layer 1
            rep((H, H)), rep((1, H)),                     # encoder layer 2
            rep((E, H)), rep((1, H)),                     # tau embedding
            rep((1, H)),                                  # final fc weight row
        ],
        out_specs=pl.BlockSpec((TB, N), lambda b: (b, 0)),
        compiler_params=pltpu.CompilerParams(
            dimension_semantics=("parallel",)),
    )(xat,
      w1, params["b1"], w2, params["b2"],
      we, params["be"], wf_row)

    # Drop pad rows; add the final-fc scalar bias and take the mean outside.
    quantiles = quantiles_p[:B] + params["bf"][0, 0]
    q_value = jnp.mean(quantiles, axis=1, keepdims=True)
    return q_value, quantiles, taus


def init_params(key, obs_dim, act_dim, hidden_size, embed_size):
    """Deterministic nn.Linear-style init (uniform +-1/sqrt(fan_in))."""
    D = obs_dim + act_dim
    keys = jax.random.split(key, 8)

    def linear(kw, kb, fan_in, fan_out):
        bound = 1.0 / math.sqrt(fan_in)
        w = jax.random.uniform(kw, (fan_in, fan_out), jnp.float32, -bound, bound)
        b = jax.random.uniform(kb, (1, fan_out), jnp.float32, -bound, bound)
        return w, b

    w1, b1 = linear(keys[0], keys[1], D, hidden_size)
    w2, b2 = linear(keys[2], keys[3], hidden_size, hidden_size)
    we, be = linear(keys[4], keys[5], embed_size, hidden_size)
    wf, bf = linear(keys[6], keys[7], hidden_size, 1)
    return dict(w1=w1, b1=b1, w2=w2, b2=b2, we=we, be=be, wf=wf, bf=bf)


def reference(x, action, taus, params):
    """Pure-JAX f32 reference mirroring the PyTorch forward semantics."""
    xa = jnp.concatenate([x, action], axis=-1)
    h = jax.nn.relu(xa @ params["w1"] + params["b1"])
    h = jax.nn.relu(h @ params["w2"] + params["b2"])
    E = params["we"].shape[0]
    steps = jnp.arange(E, dtype=jnp.float32) + 1.0
    prior = jnp.cos(math.pi * steps[None, None, :] * taus[:, :, None])
    phi = jax.nn.relu(prior @ params["we"] + params["be"])
    prod = h[:, None, :] * phi
    quantiles = (prod @ params["wf"] + params["bf"])[..., 0]
    q_value = quantiles.mean(axis=1, keepdims=True)
    return q_value, quantiles


if __name__ == "__main__":
    key = jax.random.PRNGKey(0)
    B, obs_dim, act_dim = 2, 12, 4
    hidden_size, embed_size = 64, 64
    n_quantiles, n_greedy_quantiles = 32, 8   # eval mode -> n_greedy_quantiles used

    k_x, k_a, k_p = jax.random.split(key, 3)
    x = jax.random.normal(k_x, (B, obs_dim), jnp.float32)
    action = jax.random.normal(k_a, (B, act_dim), jnp.float32)
    params = init_params(k_p, obs_dim, act_dim, hidden_size, embed_size)

    # _make_taus with training=False: linspace(0, 1, n_greedy_quantiles) per row.
    # TODO(synk): training-mode torch.rand taus not reproduced (nondeterministic in
    # torch); the kernel accepts arbitrary per-row taus, so training mode only needs
    # different taus as input.
    taus = jnp.tile(
        jnp.linspace(0.0, 1.0, n_greedy_quantiles, dtype=jnp.float32)[None, :],
        (B, 1))

    q_value, quantiles, taus_out = iqn_q_function(x, action, taus, params)
    jax.block_until_ready((q_value, quantiles, taus_out))

    q_ref, quant_ref = reference(x, action, taus, params)
    assert q_value.shape == (B, 1) and quantiles.shape == (B, n_greedy_quantiles)
    # bf16 MXU operands -> loosened tolerance vs. the f32 reference.
    assert jnp.allclose(quantiles, quant_ref, atol=3e-2, rtol=3e-2)
    assert jnp.allclose(q_value, q_ref, atol=3e-2, rtol=3e-2)
    print("KERNEL_OK")
</pallas_src>

<mosaic_0001>
module attributes {stable_mosaic.version = 11 : i64} {
  func.func @_iqn_kernel(%arg0: i32, %arg1: memref<8x24xf32, #tpu.memory_space<vmem>>, %arg2: memref<16x64xbf16, #tpu.memory_space<vmem>>, %arg3: memref<1x64xf32, #tpu.memory_space<vmem>>, %arg4: memref<64x64xbf16, #tpu.memory_space<vmem>>, %arg5: memref<1x64xf32, #tpu.memory_space<vmem>>, %arg6: memref<64x64xbf16, #tpu.memory_space<vmem>>, %arg7: memref<1x64xf32, #tpu.memory_space<vmem>>, %arg8: memref<1x64xf32, #tpu.memory_space<vmem>>, %arg9: memref<8x8xf32, #tpu.memory_space<vmem>>) attributes {dimension_semantics = [#tpu.dimension_semantics<parallel>], iteration_bounds = array<i64: 1>, scalar_prefetch = 0 : i64, scratch_operands = 0 : i64, tpu.core_type = #tpu.core_type<tc>, window_params = [{transform_indices = @transform_0, window_bounds = array<i64: 8, 24>}, {pipeline_mode = #tpu.pipeline_mode<synchronous>, transform_indices = @transform_1, window_bounds = array<i64: 16, 64>}, {pipeline_mode = #tpu.pipeline_mode<synchronous>, transform_indices = @transform_2, window_bounds = array<i64: 1, 64>}, {pipeline_mode = #tpu.pipeline_mode<synchronous>, transform_indices = @transform_3, window_bounds = array<i64: 64, 64>}, {pipeline_mode = #tpu.pipeline_mode<synchronous>, transform_indices = @transform_4, window_bounds = array<i64: 1, 64>}, {pipeline_mode = #tpu.pipeline_mode<synchronous>, transform_indices = @transform_5, window_bounds = array<i64: 64, 64>}, {pipeline_mode = #tpu.pipeline_mode<synchronous>, transform_indices = @transform_6, window_bounds = array<i64: 1, 64>}, {pipeline_mode = #tpu.pipeline_mode<synchronous>, transform_indices = @transform_7, window_bounds = array<i64: 1, 64>}, {transform_indices = @transform_8, window_bounds = array<i64: 8, 8>}]} {
    %c0 = arith.constant 0 : index
    %c0_0 = arith.constant 0 : index
    %0 = vector.load %arg1[%c0, %c0_0] : memref<8x24xf32, #tpu.memory_space<vmem>>, vector<8x24xf32>
    %1 = vector.extract_strided_slice %0 {offsets = [0, 0], sizes = [8, 16], strides = [1, 1]} : vector<8x24xf32> to vector<8x16xf32>
    %2 = arith.truncf %1 : vector<8x16xf32> to vector<8x16xbf16>
    %3 = vector.extract_strided_slice %0 {offsets = [0, 16], sizes = [8, 8], strides = [1, 1]} : vector<8x24xf32> to vector<8x8xf32>
    %c0_1 = arith.constant 0 : index
    %c0_2 = arith.constant 0 : index
    %4 = vector.load %arg2[%c0_1, %c0_2] : memref<16x64xbf16, #tpu.memory_space<vmem>>, vector<16x64xbf16>
    %cst = arith.constant dense<0.000000e+00> : vector<8x64xf32>
    %5 = tpu.matmul %2, %4, %cst {dimension_numbers = #tpu.dot_dimension_numbers<[1], [0], [0], [1], [0, 0, 1, 1], [], []>} : vector<8x16xbf16>, vector<16x64xbf16>, vector<8x64xf32> -> vector<8x64xf32>
    %c0_3 = arith.constant 0 : index
    %c0_4 = arith.constant 0 : index
    %6 = vector.load %arg3[%c0_3, %c0_4] : memref<1x64xf32, #tpu.memory_space<vmem>>, vector<1x64xf32>
    %7 = vector.broadcast %6 : vector<1x64xf32> to vector<8x64xf32>
    %8 = arith.addf %5, %7 : vector<8x64xf32>
    %cst_5 = arith.constant 0.000000e+00 : f32
    %9 = vector.broadcast %cst_5 : f32 to vector<8x64xf32>
    %10 = arith.maximumf %8, %9 : vector<8x64xf32>
    %11 = arith.truncf %10 : vector<8x64xf32> to vector<8x64xbf16>
    %c0_6 = arith.constant 0 : index
    %c0_7 = arith.constant 0 : index
    %12 = vector.load %arg4[%c0_6, %c0_7] : memref<64x64xbf16, #tpu.memory_space<vmem>>, vector<64x64xbf16>
    %cst_8 = arith.constant dense<0.000000e+00> : vector<8x64xf32>
    %13 = tpu.matmul %11, %12, %cst_8 {dimension_numbers = #tpu.dot_dimension_numbers<[1], [0], [0], [1], [0, 0, 1, 1], [], []>} : vector<8x64xbf16>, vector<64x64xbf16>, vector<8x64xf32> -> vector<8x64xf32>
    %c0_9 = arith.constant 0 : index
    %c0_10 = arith.constant 0 : index
    %14 = vector.load %arg5[%c0_9, %c0_10] : memref<1x64xf32, #tpu.memory_space<vmem>>, vector<1x64xf32>
    %15 = vector.broadcast %14 : vector<1x64xf32> to vector<8x64xf32>
    %16 = arith.addf %13, %15 : vector<8x64xf32>
    %cst_11 = arith.constant 0.000000e+00 : f32
    %17 = vector.broadcast %cst_11 : f32 to vector<8x64xf32>
    %18 = arith.maximumf %16, %17 : vector<8x64xf32>
    %c0_12 = arith.constant 0 : index
    %c0_13 = arith.constant 0 : index
    %19 = vector.load %arg8[%c0_12, %c0_13] : memref<1x64xf32, #tpu.memory_space<vmem>>, vector<1x64xf32>
    %20 = vector.broadcast %19 : vector<1x64xf32> to vector<8x64xf32>
    %21 = arith.mulf %18, %20 : vector<8x64xf32>
    %22 = tpu.iota {dimensions = array<i32: 1>} : vector<1x64xi32>
    %c1_i32 = arith.constant 1 : i32
    %23 = vector.broadcast %c1_i32 : i32 to vector<1x64xi32>
    %24 = arith.addi %22, %23 : vector<1x64xi32>
    %25 = arith.sitofp %24 : vector<1x64xi32> to vector<1x64xf32>
    %cst_14 = arith.constant 3.14159274 : f32
    %26 = vector.broadcast %cst_14 : f32 to vector<1x64xf32>
    %27 = arith.mulf %25, %26 : vector<1x64xf32>
    %28 = vector.extract_strided_slice %3 {offsets = [0, 0], sizes = [8, 1], strides = [1, 1]} : vector<8x8xf32> to vector<8x1xf32>
    %29 = vector.broadcast %28 : vector<8x1xf32> to vector<8x64xf32>
    %30 = vector.broadcast %27 : vector<1x64xf32> to vector<8x64xf32>
    %31 = arith.mulf %29, %30 : vector<8x64xf32>
    %32 = math.cos %31 : vector<8x64xf32>
    %33 = arith.truncf %32 : vector<8x64xf32> to vector<8x64xbf16>
    %c0_15 = arith.constant 0 : index
    %c0_16 = arith.constant 0 : index
    %34 = vector.load %arg6[%c0_15, %c0_16] : memref<64x64xbf16, #tpu.memory_space<vmem>>, vector<64x64xbf16>
    %cst_17 = arith.constant dense<0.000000e+00> : vector<8x64xf32>
    %35 = tpu.matmul %33, %34, %cst_17 {dimension_numbers = #tpu.dot_dimension_numbers<[1], [0], [0], [1], [0, 0, 1, 1], [], []>} : vector<8x64xbf16>, vector<64x64xbf16>, vector<8x64xf32> -> vector<8x64xf32>
    %c0_18 = arith.constant 0 : index
    %c0_19 = arith.constant 0 : index
    %36 = vector.load %arg7[%c0_18, %c0_19] : memref<1x64xf32, #tpu.memory_space<vmem>>, vector<1x64xf32>
    %37 = vector.broadcast %36 : vector<1x64xf32> to vector<8x64xf32>
    %38 = arith.addf %35, %37 : vector<8x64xf32>
    %cst_20 = arith.constant 0.000000e+00 : f32
    %39 = vector.broadcast %cst_20 : f32 to vector<8x64xf32>
    %40 = arith.maximumf %38, %39 : vector<8x64xf32>
    %41 = arith.mulf %21, %40 : vector<8x64xf32>
    %cst_21 = arith.constant dense<0.000000e+00> : vector<8xf32>
    %42 = vector.multi_reduction <add>, %41, %cst_21 [1] : vector<8x64xf32> to vector<8xf32>
    %43 = vector.shape_cast %42 : vector<8xf32> to vector<8x1xf32>
    %c0_22 = arith.constant 0 : index
    %c0_23 = arith.constant 0 : index
    %44 = vector.load %arg9[%c0_22, %c0_23] : memref<8x8xf32, #tpu.memory_space<vmem>>, vector<8x1xf32>
    tpu.vector_store %arg9[%c0_22, %c0_23], %43 {strides = array<i32>} : memref<8x8xf32, #tpu.memory_space<vmem>>, vector<8x1xf32>,
    %45 = vector.extract_strided_slice %3 {offsets = [0, 1], sizes = [8, 1], strides = [1, 1]} : vector<8x8xf32> to vector<8x1xf32>
    %46 = vector.broadcast %45 : vector<8x1xf32> to vector<8x64xf32>
    %47 = vector.broadcast %27 : vector<1x64xf32> to vector<8x64xf32>
    %48 = arith.mulf %46, %47 : vector<8x64xf32>
    %49 = math.cos %48 : vector<8x64xf32>
    %50 = arith.truncf %49 : vector<8x64xf32> to vector<8x64xbf16>
    %c0_24 = arith.constant 0 : index
    %c0_25 = arith.constant 0 : index
    %51 = vector.load %arg6[%c0_24, %c0_25] : memref<64x64xbf16, #tpu.memory_space<vmem>>, vector<64x64xbf16>
    %cst_26 = arith.constant dense<0.000000e+00> : vector<8x64xf32>
    %52 = tpu.matmul %50, %51, %cst_26 {dimension_numbers = #tpu.dot_dimension_numbers<[1], [0], [0], [1], [0, 0, 1, 1], [], []>} : vector<8x64xbf16>, vector<64x64xbf16>, vector<8x64xf32> -> vector<8x64xf32>
    %c0_27 = arith.constant 0 : index
    %c0_28 = arith.constant 0 : index
    %53 = vector.load %arg7[%c0_27, %c0_28] : memref<1x64xf32, #tpu.memory_space<vmem>>, vector<1x64xf32>
    %54 = vector.broadcast %53 : vector<1x64xf32> to vector<8x64xf32>
    %55 = arith.addf %52, %54 : vector<8x64xf32>
    %cst_29 = arith.constant 0.000000e+00 : f32
    %56 = vector.broadcast %cst_29 : f32 to vector<8x64xf32>
    %57 = arith.maximumf %55, %56 : vector<8x64xf32>
    %58 = arith.mulf %21, %57 : vector<8x64xf32>
    %cst_30 = arith.constant dense<0.000000e+00> : vector<8xf32>
    %59 = vector.multi_reduction <add>, %58, %cst_30 [1] : vector<8x64xf32> to vector<8xf32>
    %60 = vector.shape_cast %59 : vector<8xf32> to vector<8x1xf32>
    %c0_31 = arith.constant 0 : index
    %c1 = arith.constant 1 : index
    %61 = vector.load %arg9[%c0_31, %c1] : memref<8x8xf32, #tpu.memory_space<vmem>>, vector<8x1xf32>
    tpu.vector_store %arg9[%c0_31, %c1], %60 {strides = array<i32>} : memref<8x8xf32, #tpu.memory_space<vmem>>, vector<8x1xf32>,
    %62 = vector.extract_strided_slice %3 {offsets = [0, 2], sizes = [8, 1], strides = [1, 1]} : vector<8x8xf32> to vector<8x1xf32>
    %63 = vector.broadcast %62 : vector<8x1xf32> to vector<8x64xf32>
    %64 = vector.broadcast %27 : vector<1x64xf32> to vector<8x64xf32>
    %65 = arith.mulf %63, %64 : vector<8x64xf32>
    %66 = math.cos %65 : vector<8x64xf32>
    %67 = arith.truncf %66 : vector<8x64xf32> to vector<8x64xbf16>
    %c0_32 = arith.constant 0 : index
    %c0_33 = arith.constant 0 : index
    %68 = vector.load %arg6[%c0_32, %c0_33] : memref<64x64xbf16, #tpu.memory_space<vmem>>, vector<64x64xbf16>
    %cst_34 = arith.constant dense<0.000000e+00> : vector<8x64xf32>
    %69 = tpu.matmul %67, %68, %cst_34 {dimension_numbers = #tpu.dot_dimension_numbers<[1], [0], [0], [1], [0, 0, 1, 1], [], []>} : vector<8x64xbf16>, vector<64x64xbf16>, vector<8x64xf32> -> vector<8x64xf32>
    %c0_35 = arith.constant 0 : index
    %c0_36 = arith.constant 0 : index
    %70 = vector.load %arg7[%c0_35, %c0_36] : memref<1x64xf32, #tpu.memory_space<vmem>>, vector<1x64xf32>
    %71 = vector.broadcast %70 : vector<1x64xf32> to vector<8x64xf32>
    %72 = arith.addf %69, %71 : vector<8x64xf32>
    %cst_37 = arith.constant 0.000000e+00 : f32
    %73 = vector.broadcast %cst_37 : f32 to vector<8x64xf32>
    %74 = arith.maximumf %72, %73 : vector<8x64xf32>
    %75 = arith.mulf %21, %74 : vector<8x64xf32>
    %cst_38 = arith.constant dense<0.000000e+00> : vector<8xf32>
    %76 = vector.multi_reduction <add>, %75, %cst_38 [1] : vector<8x64xf32> to vector<8xf32>
    %77 = vector.shape_cast %76 : vector<8xf32> to vector<8x1xf32>
    %c0_39 = arith.constant 0 : index
    %c2 = arith.constant 2 : index
    %78 = vector.load %arg9[%c0_39, %c2] : memref<8x8xf32, #tpu.memory_space<vmem>>, vector<8x1xf32>
    tpu.vector_store %arg9[%c0_39, %c2], %77 {strides = array<i32>} : memref<8x8xf32, #tpu.memory_space<vmem>>, vector<8x1xf32>,
    %79 = vector.extract_strided_slice %3 {offsets = [0, 3], sizes = [8, 1], strides = [1, 1]} : vector<8x8xf32> to vector<8x1xf32>
    %80 = vector.broadcast %79 : vector<8x1xf32> to vector<8x64xf32>
    %81 = vector.broadcast %27 : vector<1x64xf32> to vector<8x64xf32>
    %82 = arith.mulf %80, %81 : vector<8x64xf32>
    %83 = math.cos %82 : vector<8x64xf32>
    %84 = arith.truncf %83 : vector<8x64xf32> to vector<8x64xbf16>
    %c0_40 = arith.constant 0 : index
    %c0_41 = arith.constant 0 : index
    %85 = vector.load %arg6[%c0_40, %c0_41] : memref<64x64xbf16, #tpu.memory_space<vmem>>, vector<64x64xbf16>
    %cst_42 = arith.constant dense<0.000000e+00> : vector<8x64xf32>
    %86 = tpu.matmul %84, %85, %cst_42 {dimension_numbers = #tpu.dot_dimension_numbers<[1], [0], [0], [1], [0, 0, 1, 1], [], []>} : vector<8x64xbf16>, vector<64x64xbf16>, vector<8x64xf32> -> vector<8x64xf32>
    %c0_43 = arith.constant 0 : index
    %c0_44 = arith.constant 0 : index
    %87 = vector.load %arg7[%c0_43, %c0_44] : memref<1x64xf32, #tpu.memory_space<vmem>>, vector<1x64xf32>
    %88 = vector.broadcast %87 : vector<1x64xf32> to vector<8x64xf32>
    %89 = arith.addf %86, %88 : vector<8x64xf32>
    %cst_45 = arith.constant 0.000000e+00 : f32
    %90 = vector.broadcast %cst_45 : f32 to vector<8x64xf32>
    %91 = arith.maximumf %89, %90 : vector<8x64xf32>
    %92 = arith.mulf %21, %91 : vector<8x64xf32>
    %cst_46 = arith.constant dense<0.000000e+00> : vector<8xf32>
    %93 = vector.multi_reduction <add>, %92, %cst_46 [1] : vector<8x64xf32> to vector<8xf32>
    %94 = vector.shape_cast %93 : vector<8xf32> to vector<8x1xf32>
    %c0_47 = arith.constant 0 : index
    %c3 = arith.constant 3 : index
    %95 = vector.load %arg9[%c0_47, %c3] : memref<8x8xf32, #tpu.memory_space<vmem>>, vector<8x1xf32>
    tpu.vector_store %arg9[%c0_47, %c3], %94 {strides = array<i32>} : memref<8x8xf32, #tpu.memory_space<vmem>>, vector<8x1xf32>,
    %96 = vector.extract_strided_slice %3 {offsets = [0, 4], sizes = [8, 1], strides = [1, 1]} : vector<8x8xf32> to vector<8x1xf32>
    %97 = vector.broadcast %96 : vector<8x1xf32> to vector<8x64xf32>
    %98 = vector.broadcast %27 : vector<1x64xf32> to vector<8x64xf32>
    %99 = arith.mulf %97, %98 : vector<8x64xf32>
    %100 = math.cos %99 : vector<8x64xf32>
    %101 = arith.truncf %100 : vector<8x64xf32> to vector<8x64xbf16>
    %c0_48 = arith.constant 0 : index
    %c0_49 = arith.constant 0 : index
    %102 = vector.load %arg6[%c0_48, %c0_49] : memref<64x64xbf16, #tpu.memory_space<vmem>>, vector<64x64xbf16>
    %cst_50 = arith.constant dense<0.000000e+00> : vector<8x64xf32>
    %103 = tpu.matmul %101, %102, %cst_50 {dimension_numbers = #tpu.dot_dimension_numbers<[1], [0], [0], [1], [0, 0, 1, 1], [], []>} : vector<8x64xbf16>, vector<64x64xbf16>, vector<8x64xf32> -> vector<8x64xf32>
    %c0_51 = arith.constant 0 : index
    %c0_52 = arith.constant 0 : index
    %104 = vector.load %arg7[%c0_51, %c0_52] : memref<1x64xf32, #tpu.memory_space<vmem>>, vector<1x64xf32>
    %105 = vector.broadcast %104 : vector<1x64xf32> to vector<8x64xf32>
    %106 = arith.addf %103, %105 : vector<8x64xf32>
    %cst_53 = arith.constant 0.000000e+00 : f32
    %107 = vector.broadcast %cst_53 : f32 to vector<8x64xf32>
    %108 = arith.maximumf %106, %107 : vector<8x64xf32>
    %109 = arith.mulf %21, %108 : vector<8x64xf32>
    %cst_54 = arith.constant dense<0.000000e+00> : vector<8xf32>
    %110 = vector.multi_reduction <add>, %109, %cst_54 [1] : vector<8x64xf32> to vector<8xf32>
    %111 = vector.shape_cast %110 : vector<8xf32> to vector<8x1xf32>
    %c0_55 = arith.constant 0 : index
    %c4 = arith.constant 4 : index
    %112 = vector.load %arg9[%c0_55, %c4] : memref<8x8xf32, #tpu.memory_space<vmem>>, vector<8x1xf32>
    tpu.vector_store %arg9[%c0_55, %c4], %111 {strides = array<i32>} : memref<8x8xf32, #tpu.memory_space<vmem>>, vector<8x1xf32>,
    %113 = vector.extract_strided_slice %3 {offsets = [0, 5], sizes = [8, 1], strides = [1, 1]} : vector<8x8xf32> to vector<8x1xf32>
    %114 = vector.broadcast %113 : vector<8x1xf32> to vector<8x64xf32>
    %115 = vector.broadcast %27 : vector<1x64xf32> to vector<8x64xf32>
    %116 = arith.mulf %114, %115 : vector<8x64xf32>
    %117 = math.cos %116 : vector<8x64xf32>
    %118 = arith.truncf %117 : vector<8x64xf32> to vector<8x64xbf16>
    %c0_56 = arith.constant 0 : index
    %c0_57 = arith.constant 0 : index
    %119 = vector.load %arg6[%c0_56, %c0_57] : memref<64x64xbf16, #tpu.memory_space<vmem>>, vector<64x64xbf16>
    %cst_58 = arith.constant dense<0.000000e+00> : vector<8x64xf32>
    %120 = tpu.matmul %118, %119, %cst_58 {dimension_numbers = #tpu.dot_dimension_numbers<[1], [0], [0], [1], [0, 0, 1, 1], [], []>} : vector<8x64xbf16>, vector<64x64xbf16>, vector<8x64xf32> -> vector<8x64xf32>
    %c0_59 = arith.constant 0 : index
    %c0_60 = arith.constant 0 : index
    %121 = vector.load %arg7[%c0_59, %c0_60] : memref<1x64xf32, #tpu.memory_space<vmem>>, vector<1x64xf32>
    %122 = vector.broadcast %121 : vector<1x64xf32> to vector<8x64xf32>
    %123 = arith.addf %120, %122 : vector<8x64xf32>
    %cst_61 = arith.constant 0.000000e+00 : f32
    %124 = vector.broadcast %cst_61 : f32 to vector<8x64xf32>
    %125 = arith.maximumf %123, %124 : vector<8x64xf32>
    %126 = arith.mulf %21, %125 : vector<8x64xf32>
    %cst_62 = arith.constant dense<0.000000e+00> : vector<8xf32>
    %127 = vector.multi_reduction <add>, %126, %cst_62 [1] : vector<8x64xf32> to vector<8xf32>
    %128 = vector.shape_cast %127 : vector<8xf32> to vector<8x1xf32>
    %c0_63 = arith.constant 0 : index
    %c5 = arith.constant 5 : index
    %129 = vector.load %arg9[%c0_63, %c5] : memref<8x8xf32, #tpu.memory_space<vmem>>, vector<8x1xf32>
    tpu.vector_store %arg9[%c0_63, %c5], %128 {strides = array<i32>} : memref<8x8xf32, #tpu.memory_space<vmem>>, vector<8x1xf32>,
    %130 = vector.extract_strided_slice %3 {offsets = [0, 6], sizes = [8, 1], strides = [1, 1]} : vector<8x8xf32> to vector<8x1xf32>
    %131 = vector.broadcast %130 : vector<8x1xf32> to vector<8x64xf32>
    %132 = vector.broadcast %27 : vector<1x64xf32> to vector<8x64xf32>
    %133 = arith.mulf %131, %132 : vector<8x64xf32>
    %134 = math.cos %133 : vector<8x64xf32>
    %135 = arith.truncf %134 : vector<8x64xf32> to vector<8x64xbf16>
    %c0_64 = arith.constant 0 : index
    %c0_65 = arith.constant 0 : index
    %136 = vector.load %arg6[%c0_64, %c0_65] : memref<64x64xbf16, #tpu.memory_space<vmem>>, vector<64x64xbf16>
    %cst_66 = arith.constant dense<0.000000e+00> : vector<8x64xf32>
    %137 = tpu.matmul %135, %136, %cst_66 {dimension_numbers = #tpu.dot_dimension_numbers<[1], [0], [0], [1], [0, 0, 1, 1], [], []>} : vector<8x64xbf16>, vector<64x64xbf16>, vector<8x64xf32> -> vector<8x64xf32>
    %c0_67 = arith.constant 0 : index
    %c0_68 = arith.constant 0 : index
    %138 = vector.load %arg7[%c0_67, %c0_68] : memref<1x64xf32, #tpu.memory_space<vmem>>, vector<1x64xf32>
    %139 = vector.broadcast %138 : vector<1x64xf32> to vector<8x64xf32>
    %140 = arith.addf %137, %139 : vector<8x64xf32>
    %cst_69 = arith.constant 0.000000e+00 : f32
    %141 = vector.broadcast %cst_69 : f32 to vector<8x64xf32>
    %142 = arith.maximumf %140, %141 : vector<8x64xf32>
    %143 = arith.mulf %21, %142 : vector<8x64xf32>
    %cst_70 = arith.constant dense<0.000000e+00> : vector<8xf32>
    %144 = vector.multi_reduction <add>, %143, %cst_70 [1] : vector<8x64xf32> to vector<8xf32>
    %145 = vector.shape_cast %144 : vector<8xf32> to vector<8x1xf32>
    %c0_71 = arith.constant 0 : index
    %c6 = arith.constant 6 : index
    %146 = vector.load %arg9[%c0_71, %c6] : memref<8x8xf32, #tpu.memory_space<vmem>>, vector<8x1xf32>
    tpu.vector_store %arg9[%c0_71, %c6], %145 {strides = array<i32>} : memref<8x8xf32, #tpu.memory_space<vmem>>, vector<8x1xf32>,
    %147 = vector.extract_strided_slice %3 {offsets = [0, 7], sizes = [8, 1], strides = [1, 1]} : vector<8x8xf32> to vector<8x1xf32>
    %148 = vector.broadcast %147 : vector<8x1xf32> to vector<8x64xf32>
    %149 = vector.broadcast %27 : vector<1x64xf32> to vector<8x64xf32>
    %150 = arith.mulf %148, %149 : vector<8x64xf32>
    %151 = math.cos %150 : vector<8x64xf32>
    %152 = arith.truncf %151 : vector<8x64xf32> to vector<8x64xbf16>
    %c0_72 = arith.constant 0 : index
    %c0_73 = arith.constant 0 : index
    %153 = vector.load %arg6[%c0_72, %c0_73] : memref<64x64xbf16, #tpu.memory_space<vmem>>, vector<64x64xbf16>
    %cst_74 = arith.constant dense<0.000000e+00> : vector<8x64xf32>
    %154 = tpu.matmul %152, %153, %cst_74 {dimension_numbers = #tpu.dot_dimension_numbers<[1], [0], [0], [1], [0, 0, 1, 1], [], []>} : vector<8x64xbf16>, vector<64x64xbf16>, vector<8x64xf32> -> vector<8x64xf32>
    %c0_75 = arith.constant 0 : index
    %c0_76 = arith.constant 0 : index
    %155 = vector.load %arg7[%c0_75, %c0_76] : memref<1x64xf32, #tpu.memory_space<vmem>>, vector<1x64xf32>
    %156 = vector.broadcast %155 : vector<1x64xf32> to vector<8x64xf32>
    %157 = arith.addf %154, %156 : vector<8x64xf32>
    %cst_77 = arith.constant 0.000000e+00 : f32
    %158 = vector.broadcast %cst_77 : f32 to vector<8x64xf32>
    %159 = arith.maximumf %157, %158 : vector<8x64xf32>
    %160 = arith.mulf %21, %159 : vector<8x64xf32>
    %cst_78 = arith.constant dense<0.000000e+00> : vector<8xf32>
    %161 = vector.multi_reduction <add>, %160, %cst_78 [1] : vector<8x64xf32> to vector<8xf32>
    %162 = vector.shape_cast %161 : vector<8xf32> to vector<8x1xf32>
    %c0_79 = arith.constant 0 : index
    %c7 = arith.constant 7 : index
    %163 = vector.load %arg9[%c0_79, %c7] : memref<8x8xf32, #tpu.memory_space<vmem>>, vector<8x1xf32>
    tpu.vector_store %arg9[%c0_79, %c7], %162 {strides = array<i32>} : memref<8x8xf32, #tpu.memory_space<vmem>>, vector<8x1xf32>,
    return
  }
  func.func @transform_0(%arg0: i32) -> (i32, i32) {
    %c0_i32 = arith.constant 0 : i32
    %c0_i32_0 = arith.constant 0 : i32
    return %arg0, %c0_i32 : i32, i32
  }
  func.func @transform_1(%arg0: i32) -> (i32, i32) {
    %c0_i32 = arith.constant 0 : i32
    %c0_i32_0 = arith.constant 0 : i32
    %c0_i32_1 = arith.constant 0 : i32
    return %c0_i32, %c0_i32_0 : i32, i32
  }
  func.func @transform_2(%arg0: i32) -> (i32, i32) {
    %c0_i32 = arith.constant 0 : i32
    %c0_i32_0 = arith.constant 0 : i32
    %c0_i32_1 = arith.constant 0 : i32
    return %c0_i32, %c0_i32_0 : i32, i32
  }
  func.func @transform_3(%arg0: i32) -> (i32, i32) {
    %c0_i32 = arith.constant 0 : i32
    %c0_i32_0 = arith.constant 0 : i32
    %c0_i32_1 = arith.constant 0 : i32
    return %c0_i32, %c0_i32_0 : i32, i32
  }
  func.func @transform_4(%arg0: i32) -> (i32, i32) {
    %c0_i32 = arith.constant 0 : i32
    %c0_i32_0 = arith.constant 0 : i32
    %c0_i32_1 = arith.constant 0 : i32
    return %c0_i32, %c0_i32_0 : i32, i32
  }
  func.func @transform_5(%arg0: i32) -> (i32, i32) {
    %c0_i32 = arith.constant 0 : i32
    %c0_i32_0 = arith.constant 0 : i32
    %c0_i32_1 = arith.constant 0 : i32
    return %c0_i32, %c0_i32_0 : i32, i32
  }
  func.func @transform_6(%arg0: i32) -> (i32, i32) {
    %c0_i32 = arith.constant 0 : i32
    %c0_i32_0 = arith.constant 0 : i32
    %c0_i32_1 = arith.constant 0 : i32
    return %c0_i32, %c0_i32_0 : i32, i32
  }
  func.func @transform_7(%arg0: i32) -> (i32, i32) {
    %c0_i32 = arith.constant 0 : i32
    %c0_i32_0 = arith.constant 0 : i32
    %c0_i32_1 = arith.constant 0 : i32
    return %c0_i32, %c0_i32_0 : i32, i32
  }
  func.func @transform_8(%arg0: i32) -> (i32, i32) {
    %c0_i32 = arith.constant 0 : i32
    %c0_i32_0 = arith.constant 0 : i32
    return %arg0, %c0_i32 : i32, i32
  }
}

</mosaic_0001>

<llo_original>
// kernel: tpu_custom_call.1
$region0: #{tpu_custom_call.1}
  #allocation0 [shape = 'u32[]', space=smem, size = 0x4, offset = 0x4, fixed_abs, tag = 'smem constant byte address 0x4 - core index']
  #allocation1 [shape = 'u32[72,128]{1,0:T(1,128)}', space=vmem, size = 0x9000, scoped, tag = 'internal scratch']
  %s0 = inlined_call_operand.hbm [shape: f32[8,24], index: 0, kind: input, shape index: {}]
  %s1 = inlined_call_operand.hbm [shape: bf16[16,64], index: 1, kind: input, shape index: {}]
  %s2 = inlined_call_operand.vmem [shape: f32[1,64], index: 2, kind: input, shape index: {}]
  %s3 = inlined_call_operand.hbm [shape: bf16[64,64], index: 3, kind: input, shape index: {}]
  %s4 = inlined_call_operand.vmem [shape: f32[1,64], index: 4, kind: input, shape index: {}]
  %s5 = inlined_call_operand.hbm [shape: bf16[64,64], index: 5, kind: input, shape index: {}]
  %s6 = inlined_call_operand.vmem [shape: f32[1,64], index: 6, kind: input, shape index: {}]
  %s7 = inlined_call_operand.vmem [shape: f32[1,64], index: 7, kind: input, shape index: {}]
  %s8 = inlined_call_operand.hbm [shape: f32[8,8], index: 8, kind: output, shape index: {}]
  %s9 = sld [smem:[#allocation0]]
  $region58: #{tpu_custom_call.1} parent=0
    _
  %s11 = ssub.s32 1, %s9
  %s12 = scalar_select 0, %s11, %s9
  $region1: #{tpu_custom_call.1} parent=0
    #allocation2 [shape = 'u8[4096]{0}', space=vmem, size = 0x1000, scoped, tag = 'input window, operand 0, single buffered']
    #allocation3 [shape = 's32[1]{0}', space=sflag, size = 0x4, scoped, tag = 'scoped memory for tpu_custom_call.1']
    #allocation4 [shape = 's32[1]{0}', space=sflag, size = 0x4, scoped, tag = 'scoped memory for tpu_custom_call.1']
    #allocation5 [shape = 'u8[4096]{0}', space=vmem, size = 0x1000, scoped, tag = 'input window, operand 1, single buffered']
    #allocation6 [shape = 's32[1]{0}', space=sflag, size = 0x4, scoped, tag = 'scoped memory for tpu_custom_call.1']
    #allocation7 [shape = 'u8[16384]{0}', space=vmem, size = 0x4000, scoped, tag = 'input window, operand 3, single buffered']
    #allocation8 [shape = 'u8[16384]{0}', space=vmem, size = 0x4000, scoped, tag = 'input window, operand 5, single buffered']
    #allocation9 [shape = 's32[1]{0}', space=sflag, size = 0x4, scoped, tag = 'scoped memory for tpu_custom_call.1']
    #allocation10 [shape = 'u8[4096]{0}', space=vmem, size = 0x1000, scoped, tag = 'output window, operand 0, single buffered']
    %13 = vsyncpa [#allocation3], 0
    %14 = vsyncpa [#allocation6], 0
    %15 = vsyncpa [#allocation9], 0
    %16 = vsyncpa [#allocation4], 0
    // Predicated region
    $region2: #{tpu_custom_call.1} parent=1 // pred_check
      _
    $region3: #{tpu_custom_call.1} parent=1 // pred_check_branch
      %18 = sbr.rel (0) target = $region5
    $region4: #{tpu_custom_call.1} parent=1 // pred_region
      %20 = vsyncadd [#allocation3], 0
      %s22 = sshll.u32 %s0, 4
      %s23 = int_to_ptr.hbm [resolvable:$true] %s22
      %s24 = sshll.u32 [#allocation2], 4
      %s25 = int_to_ptr.vmem [resolvable:$true] %s24
      %27 = dma.hbm_to_vmem [thread:$0]  %s23, 128, %s25, [#allocation3]
    $region5: #{tpu_custom_call.1} parent=1 // pred_fallthru
      _
    // Predicated region
    $region6: #{tpu_custom_call.1} parent=1 // pred_check
      _
    $region7: #{tpu_custom_call.1} parent=1 // pred_check_branch
      %29 = sbr.rel (0) target = $region9
    $region8: #{tpu_custom_call.1} parent=1 // pred_region
      %31 = vsyncadd [#allocation6], 0
      %s32 = sshll.u32 %s1, 4
      %s33 = int_to_ptr.hbm [resolvable:$true] %s32
      %s34 = sshll.u32 [#allocation5], 4
      %s35 = int_to_ptr.vmem [resolvable:$true] %s34
      %40 = dma.hbm_to_vmem [thread:$0]  %s33, 128, %s35, [#allocation6], 64, 64, 4
    $region9: #{tpu_custom_call.1} parent=1 // pred_fallthru
      _
    // Predicated region
    $region10: #{tpu_custom_call.1} parent=1 // pred_check
      _
    $region11: #{tpu_custom_call.1} parent=1 // pred_check_branch
      %42 = sbr.rel (0) target = $region13
    $region12: #{tpu_custom_call.1} parent=1 // pred_region
      _
    $region13: #{tpu_custom_call.1} parent=1 // pred_fallthru
      _
    // Predicated region
    $region14: #{tpu_custom_call.1} parent=1 // pred_check
      _
    $region15: #{tpu_custom_call.1} parent=1 // pred_check_branch
      %44 = sbr.rel (0) target = $region17
    $region16: #{tpu_custom_call.1} parent=1 // pred_region
      %46 = vsyncadd [#allocation6], 0
      %s47 = sshll.u32 %s3, 4
      %s48 = int_to_ptr.hbm [resolvable:$true] %s47
      %s49 = sshll.u32 [#allocation7], 4
      %s50 = int_to_ptr.vmem [resolvable:$true] %s49
      %55 = dma.hbm_to_vmem [thread:$0]  %s48, 512, %s50, [#allocation6], 64, 64, 4
    $region17: #{tpu_custom_call.1} parent=1 // pred_fallthru
      _
    // Predicated region
    $region18: #{tpu_custom_call.1} parent=1 // pred_check
      _
    $region19: #{tpu_custom_call.1} parent=1 // pred_check_branch
      %57 = sbr.rel (0) target = $region21
    $region20: #{tpu_custom_call.1} parent=1 // pred_region
      _
    $region21: #{tpu_custom_call.1} parent=1 // pred_fallthru
      _
    // Predicated region
    $region22: #{tpu_custom_call.1} parent=1 // pred_check
      _
    $region23: #{tpu_custom_call.1} parent=1 // pred_check_branch
      %59 = sbr.rel (0) target = $region25
    $region24: #{tpu_custom_call.1} parent=1 // pred_region
      %61 = vsyncadd [#allocation9], 0
      %s62 = sshll.u32 %s5, 4
      %s63 = int_to_ptr.hbm [resolvable:$true] %s62
      %s64 = sshll.u32 [#allocation8], 4
      %s65 = int_to_ptr.vmem [resolvable:$true] %s64
      %70 = dma.hbm_to_vmem [thread:$0]  %s63, 512, %s65, [#allocation9], 64, 64, 4
    $region25: #{tpu_custom_call.1} parent=1 // pred_fallthru
      _
    // Predicated region
    $region26: #{tpu_custom_call.1} parent=1 // pred_check
      _
    $region27: #{tpu_custom_call.1} parent=1 // pred_check_branch
      %72 = sbr.rel (0) target = $region29
    $region28: #{tpu_custom_call.1} parent=1 // pred_region
      _
    $region29: #{tpu_custom_call.1} parent=1 // pred_fallthru
      _
    // Predicated region
    $region30: #{tpu_custom_call.1} parent=1 // pred_check
      _
    $region31: #{tpu_custom_call.1} parent=1 // pred_check_branch
      %74 = sbr.rel (0) target = $region33
    $region32: #{tpu_custom_call.1} parent=1 // pred_region
      _
    $region33: #{tpu_custom_call.1} parent=1 // pred_fallthru
      _
    // Predicated region
    $region34: #{tpu_custom_call.1} parent=1 // pred_check
      _
    $region35: #{tpu_custom_call.1} parent=1 // pred_check_branch
      %76 = sbr.rel (0) target = $region37
    $region36: #{tpu_custom_call.1} parent=1 // pred_region
      %78 = dma.done [#allocation3], 128
    $region37: #{tpu_custom_call.1} parent=1 // pred_fallthru
      _
    // Predicated region
    $region38: #{tpu_custom_call.1} parent=1 // pred_check
      _
    $region39: #{tpu_custom_call.1} parent=1 // pred_check_branch
      %80 = sbr.rel (0) target = $region41
    $region40: #{tpu_custom_call.1} parent=1 // pred_region
      %82 = dma.done [#allocation6], 128
    $region41: #{tpu_custom_call.1} parent=1 // pred_fallthru
      _
    // Predicated region
    $region42: #{tpu_custom_call.1} parent=1 // pred_check
      _
    $region43: #{tpu_custom_call.1} parent=1 // pred_check_branch
      %84 = sbr.rel (0) target = $region45
    $region44: #{tpu_custom_call.1} parent=1 // pred_region
      %86 = dma.done [#allocation6], 512
    $region45: #{tpu_custom_call.1} parent=1 // pred_fallthru
      _
    // Predicated region
    $region46: #{tpu_custom_call.1} parent=1 // pred_check
      _
    $region47: #{tpu_custom_call.1} parent=1 // pred_check_branch
      %88 = sbr.rel (0) target = $region49
    $region48: #{tpu_custom_call.1} parent=1 // pred_region
      %90 = dma.done [#allocation9], 512
    $region49: #{tpu_custom_call.1} parent=1 // pred_fallthru
      _
    %v92 = vld [vmem:[#allocation2] sm:$0xff]
    %v93 = vpack.c.bf16 %v92, %v92
    %v94 = vld [vmem:[#allocation5] sm:$0xf]
    %v95 = vld [vmem:[#allocation5 + $0x4] sm:$0xf]
    %v96 = vld [vmem:[%s2] sm:$0x1]
    %v98 = vperm.slane %v96, 0
    %v102 = vunpack.c.l.b16 %v94
    %v103 = vunpack.c.l.b16 %v95
    %v104 = vpack.c.b16 %v103, %v102
    %vm106 = vcmask 130048
    %v108 = vsel %vm106, %v93, 0
    %110 = vmatpush.bf16.msra.mxu0 0
    %111 = vmatpush.bf16.msra.mxu0 0
    %112 = vmatpush.bf16.msra.mxu0 0
    %113 = vmatpush.bf16.msra.mxu0 0
    %114 = vmatpush.bf16.msra.mxu0 0
    %115 = vmatpush.bf16.msra.mxu0 0
    %116 = vmatpush.bf16.msra.mxu0 0
    %117 = vmatpush.bf16.msra.mxu0 %v104
    %118 = vmatmul.bf16.gmra.mxu0 %v108
    %v119 = vpop.f32.mrf.mxu0
    %v120 = vadd.f32 %v98, %v119
    %v121 = vpop.f32.mrf.mxu0
    %122 = vdwg.mxu0
    %v123 = vmax.f32 %v120, 0.0
    %v124 = vpack.c.bf16 %v123, %v123
    %v125 = vld [vmem:[#allocation7] sm:$0xf]
    %v126 = vld [vmem:[#allocation7 + $0x4] sm:$0xf]
    %v127 = vld [vmem:[#allocation7 + $0x8] sm:$0xf]
    %v128 = vld [vmem:[#allocation7 + $0xc] sm:$0xf]
    %v129 = vld [vmem:[#allocation7 + $0x10] sm:$0xf]
    %v130 = vld [vmem:[#allocation7 + $0x14] sm:$0xf]
    %v131 = vld [vmem:[#allocation7 + $0x18] sm:$0xf]
    %v132 = vld [vmem:[#allocation7 + $0x1c] sm:$0xf]
    %v133 = vld [vmem:[%s4] sm:$0x1]
    %v135 = vperm.slane %v133, 0
    %v145 = vunpack.c.l.b16 %v125
    %v146 = vunpack.c.l.b16 %v126
    %v147 = vunpack.c.l.b16 %v127
    %v148 = vunpack.c.l.b16 %v128
    %v149 = vunpack.c.l.b16 %v129
    %v150 = vunpack.c.l.b16 %v130
    %v151 = vunpack.c.l.b16 %v131
    %v152 = vunpack.c.l.b16 %v132
    %v153 = vpack.c.b16 %v146, %v145
    %v154 = vpack.c.b16 %v148, %v147
    %v155 = vpack.c.b16 %v150, %v149
    %v156 = vpack.c.b16 %v152, %v151
    %vm161 = vcmask 523264
    %v163 = vsel %vm161, %v124, 0
    %165 = vmatpush.bf16.msra.mxu0 0
    %166 = vmatpush.bf16.msra.mxu0 0
    %167 = vmatpush.bf16.msra.mxu0 0
    %168 = vmatpush.bf16.msra.mxu0 0
    %169 = vmatpush.bf16.msra.mxu0 %v156
    %170 = vmatpush.bf16.msra.mxu0 %v155
    %171 = vmatpush.bf16.msra.mxu0 %v154
    %172 = vmatpush.bf16.msra.mxu0 %v153
    %173 = vmatmul.bf16.gmra.mxu0 %v163
    %v174 = vpop.f32.mrf.mxu0
    %v175 = vadd.f32 %v135, %v174
    %v176 = vpop.f32.mrf.mxu0
    %177 = vdwg.mxu0
    %v178 = vmax.f32 %v175, 0.0
    %v179 = vld [vmem:[%s7] sm:$0x1]
    %v181 = vperm.slane %v179, 0
    %v183 = vmul.f32 %v178, %v181
    %v184 = vlaneseq
    %v185 = vand.u32 %v184, 127
    %v186 = vadd.s32 %v185, 1
    %v187 = vcvt.s32.f32 %v186
    %v188 = vmul.f32 %v187, 3.1415927
    %190 = vset.pattern.permute.xlu0 16
    %191 = vperm.xlu0 %190, %v92
    %v192 = vpop.permute.xlu0 %191
    %v194 = vmul.f32 %v192, %v188
    %v195 = vand.u32 2147483647, %v194
    %vm196 = vcmp.le.f32.partialorder %v195, 0.7853982
    %vm197 = vcmp.lt.s32.totalorder %v194, 0
    %v198 = vand.u32 %v194, 2139095040
    %v199 = vshrl.u32 %v198, 23
    %v200 = vsub.s32 %v199, 127
    %v201 = vand.u32 2147483647, %v194
    %v202 = vand.u32 %v201, 8388607
    %v203 = vor.u32 %v202, 8388608
    %v204 = vsub.s32 0, %v203
    %v205 = vadd.s32 %v200, 1
    %vm206 = vcmp.gt.s32.totalorder %v205, 0
    %v207 = vsel %vm206, %v205, 0
    %v208 = vshrl.u32 %v207, 5
    %v209 = vand.u32 %v207, 31
    %v210 = vsub.s32 32, %v209
    %v211 = vshrl.u32 683565275, %v210
    %v212 = vshll.u32 683565275, %v209
    %v213 = vshrl.u32 2475754826, %v210
    %v214 = vor.u32 %v212, %v213
    %v215 = vshll.u32 2475754826, %v209
    %v216 = vshrl.u32 2131351028, %v210
    %v217 = vor.u32 %v215, %v216
    %v218 = vshll.u32 2131351028, %v209
    %v219 = vshrl.u32 2102212464, %v210
    %v220 = vor.u32 %v218, %v219
    %v221 = vshll.u32 2102212464, %v209
    %v222 = vshrl.u32 920167782, %v210
    %v223 = vor.u32 %v221, %v222
    %v224 = vshll.u32 920167782, %v209
    %v225 = vshrl.u32 1326507024, %v210
    %v226 = vor.u32 %v224, %v225
    %vm227 = vcmp.lt.s32.totalorder %v208, 1
    %vm228 = vcmp.lt.s32.totalorder %v208, 2
    %vm229 = vcmp.lt.s32.totalorder %v208, 3
    %vm230 = vcmp.lt.s32.totalorder %v208, 4
    %v231 = vsel %vm227, %v211, %v214
    %v232 = vsel %vm230, %v220, 2102212464
    %v233 = vsel %vm229, %v217, %v232
    %v234 = vsel %vm228, %v231, %v233
    %v235 = vsel %vm227, %v214, %v217
    %v236 = vsel %vm230, %v223, 920167782
    %v237 = vsel %vm229, %v220, %v236
    %v238 = vsel %vm228, %v235, %v237
    %v239 = vsel %vm227, %v217, %v220
    %v240 = vsel %vm230, %v226, 1326507024
    %v241 = vsel %vm229, %v223, %v240
    %v242 = vsel %vm228, %v239, %v241
    %v243 = vshll.u32 %v203, 8
    %v244 = vand.u32 %v243, 65535
    %v245 = vshrl.u32 %v243, 16
    %v246 = vand.u32 %v242, 65535
    %v247 = vshrl.u32 %v242, 16
    %v248 = vmul.u32 %v244, %v246
    %v249 = vmul.u32 %v244, %v247
    %v250 = vmul.u32 %v245, %v246
    %v251 = vmul.u32 %v245, %v247
    %v252 = vshll.u32 %v249, 16
    %v253 = vshrl.u32 %v249, 16
    %v254 = vshll.u32 %v250, 16
    %v255 = vshrl.u32 %v250, 16
    %vm256 = vc.u32 %v248, %v252
    %v257 = vsel %vm256, 1, 0
    %v258 = vadd.s32 %v248, %v252
    %v259 = vadd.s32 %v251, %v257
    %vm260 = vc.u32 %v258, %v254
    %v261 = vsel %vm260, 1, 0
    %v262 = vadd.s32 %v258, %v254
    %v263 = vadd.s32 %v259, %v261
    %v264 = vadd.s32 %v263, %v253
    %v265 = vadd.s32 %v264, %v255
    %v266 = vand.u32 %v243, 65535
    %v267 = vshrl.u32 %v243, 16
    %v268 = vand.u32 %v238, 65535
    %v269 = vshrl.u32 %v238, 16
    %v270 = vmul.u32 %v266, %v268
    %v271 = vmul.u32 %v266, %v269
    %v272 = vmul.u32 %v267, %v268
    %v273 = vmul.u32 %v267, %v269
    %v274 = vshll.u32 %v271, 16
    %v275 = vshrl.u32 %v271, 16
    %v276 = vshll.u32 %v272, 16
    %v277 = vshrl.u32 %v272, 16
    %vm278 = vc.u32 %v270, %v274
    %v279 = vsel %vm278, 1, 0
    %v280 = vadd.s32 %v270, %v274
    %v281 = vadd.s32 %v273, %v279
    %vm282 = vc.u32 %v280, %v276
    %v283 = vsel %vm282, 1, 0
    %v284 = vadd.s32 %v280, %v276
    %v285 = vadd.s32 %v281, %v283
    %v286 = vadd.s32 %v285, %v275
    %v287 = vadd.s32 %v286, %v277
    %v288 = vmul.u32 %v243, %v234
    %v289 = vadd.s32 %v265, %v284
    %vm290 = vc.u32 %v265, %v284
    %v291 = vadd.s32 %v287, 1
    %v292 = vsel %vm290, %v291, %v287
    %v293 = vadd.s32 %v288, %v292
    %v294 = vadd.s32 %v293, 536870912
    %v295 = vshrl.u32 %v294, 30
    %v296 = vshll.u32 %v295, 30
    %v297 = vsub.s32 %v293, %v296
    %vm298 = vcmp.lt.s32.totalorder %v297, 0
    %v299 = vsub.s32 0, %v297
    %v300 = vsel %vm298, %v299, %v297
    %v301 = vclz %v300
    %v302 = vsub.s32 %v301, 2
    %vm303 = vcmp.gt.s32.totalorder 0, %v302
    %v304 = vsel %vm303, 0, %v302
    %v305 = vsub.s32 32, %v304
    %v306 = vshll.u32 %v297, %v304
    %v307 = vshrl.u32 %v289, %v305
    %v308 = vor.u32 %v306, %v307
    %v309 = vsub.s32 4294967266, %v304
    %v310 = vadd.s32 %v309, 127
    %v311 = vshll.u32 %v310, 23
    %v312 = vor.u32 4788187, %v311
    %v313 = vand.u32 2147483647, %v312
    %v315 = vcvt.s32.f32 %v308
    %v316 = vmul.f32 %v315, %v313
    %v317 = vxor.u32 %v316, 2147483648
    %v318 = vsel %vm197, %v317, %v316
    %v319 = vsub.s32 4, %v295
    %v320 = vsel %vm197, %v319, %v295
    %v321 = vsel %vm196, %v194, %v318
    %v322 = vsel %vm196, 0, %v320
    %v323 = vmul.f32 %v321, %v321
    %v324 = vmul.f32 %v323, -0.001358992
    %v325 = vadd.f32 %v324, 0.041655596
    %v326 = vmul.f32 %v323, %v325
    %v327 = vadd.f32 %v326, -0.4999988
    %v328 = vmul.f32 %v323, %v327
    %v329 = vadd.f32 1.0, %v328
    %v330 = vmul.f32 %v321, %v321
    %v331 = vmul.f32 %v330, -0.00019511016
    %v332 = vadd.f32 %v331, 0.008332121
    %v333 = vmul.f32 %v330, %v332
    %v334 = vadd.f32 %v333, -0.16666654
    %v335 = vmul.f32 %v330, %v334
    %v336 = vadd.f32 %v335, 1.0
    %v337 = vmul.f32 %v336, %v321
    %vm338 = vweird.f32 %v194
    %v339 = vand.u32 %v322, 3
    %vm340 = vcmp.lt.s32.totalorder %v339, 2
    %vm341 = vcmp.eq.s32.totalorder %v339, 0
    %v342 = vxor.u32 %v337, 2147483648
    %v343 = vsel %vm341, %v329, %v342
    %vm344 = vcmp.eq.s32.totalorder %v339, 2
    %v345 = vxor.u32 %v329, 2147483648
    %v346 = vsel %vm344, %v345, %v337
    %v347 = vsel %vm340, %v343, %v346
    %v348 = vsel %vm338, nan, %v347
    %v349 = vpack.c.bf16 %v348, %v348
    %v350 = vld [vmem:[#allocation8] sm:$0xf]
    %v351 = vld [vmem:[#allocation8 + $0x4] sm:$0xf]
    %v352 = vld [vmem:[#allocation8 + $0x8] sm:$0xf]
    %v353 = vld [vmem:[#allocation8 + $0xc] sm:$0xf]
    %v354 = vld [vmem:[#allocation8 + $0x10] sm:$0xf]
    %v355 = vld [vmem:[#allocation8 + $0x14] sm:$0xf]
    %v356 = vld [vmem:[#allocation8 + $0x18] sm:$0xf]
    %v357 = vld [vmem:[#allocation8 + $0x1c] sm:$0xf]
    %v358 = vld [vmem:[%s6] sm:$0x1]
    %v360 = vperm.slane %v358, 0
    %v370 = vunpack.c.l.b16 %v350
    %v371 = vunpack.c.l.b16 %v351
    %v372 = vunpack.c.l.b16 %v352
    %v373 = vunpack.c.l.b16 %v353
    %v374 = vunpack.c.l.b16 %v354
    %v375 = vunpack.c.l.b16 %v355
    %v376 = vunpack.c.l.b16 %v356
    %v377 = vunpack.c.l.b16 %v357
    %v378 = vpack.c.b16 %v371, %v370
    %v379 = vpack.c.b16 %v373, %v372
    %v380 = vpack.c.b16 %v375, %v374
    %v381 = vpack.c.b16 %v377, %v376
    %v387 = vsel %vm161, %v349, 0
    %389 = vmatpush.bf16.msra.mxu0 0
    %390 = vmatpush.bf16.msra.mxu0 0
    %391 = vmatpush.bf16.msra.mxu0 0
    %392 = vmatpush.bf16.msra.mxu0 0
    %393 = vmatpush.bf16.msra.mxu0 %v381
    %394 = vmatpush.bf16.msra.mxu0 %v380
    %395 = vmatpush.bf16.msra.mxu0 %v379
    %396 = vmatpush.bf16.msra.mxu0 %v378
    %397 = vmatmul.bf16.gmra.mxu0 %v387
    %v398 = vpop.f32.mrf.mxu0
    %v399 = vadd.f32 %v360, %v398
    %v400 = vpop.f32.mrf.mxu0
    %401 = vdwg.mxu0
    %v402 = vmax.f32 %v399, 0.0
    %v403 = vmul.f32 %v183, %v402
    %v404 = vsel %vm161, %v403, 0.0
    %405 = vadd.xlane.f32.xlu0 %v404
    %v406 = vpop.xlane.xlu0 %405
    %vm407 = vcmask 7168
    %408 = vst.msk [vmem:[#allocation10] sm:$0xff] %vm407, %v406
    %409 = vset.pattern.permute.xlu0 17
    %410 = vperm.xlu0 %409, %v92
    %v411 = vpop.permute.xlu0 %410
    %v413 = vmul.f32 %v411, %v188
    %v414 = vand.u32 2147483647, %v413
    %vm415 = vcmp.le.f32.partialorder %v414, 0.7853982
    %vm416 = vcmp.lt.s32.totalorder %v413, 0
    %v417 = vand.u32 %v413, 2139095040
    %v418 = vshrl.u32 %v417, 23
    %v419 = vsub.s32 %v418, 127
    %v420 = vand.u32 2147483647, %v413
    %v421 = vand.u32 %v420, 8388607
    %v422 = vor.u32 %v421, 8388608
    %v423 = vsub.s32 0, %v422
    %v424 = vadd.s32 %v419, 1
    %vm425 = vcmp.gt.s32.totalorder %v424, 0
    %v426 = vsel %vm425, %v424, 0
    %v427 = vshrl.u32 %v426, 5
    %v428 = vand.u32 %v426, 31
    %v429 = vsub.s32 32, %v428
    %v430 = vshrl.u32 683565275, %v429
    %v431 = vshll.u32 683565275, %v428
    %v432 = vshrl.u32 2475754826, %v429
    %v433 = vor.u32 %v431, %v432
    %v434 = vshll.u32 2475754826, %v428
    %v435 = vshrl.u32 2131351028, %v429
    %v436 = vor.u32 %v434, %v435
    %v437 = vshll.u32 2131351028, %v428
    %v438 = vshrl.u32 2102212464, %v429
    %v439 = vor.u32 %v437, %v438
    %v440 = vshll.u32 2102212464, %v428
    %v441 = vshrl.u32 920167782, %v429
    %v442 = vor.u32 %v440, %v441
    %v443 = vshll.u32 920167782, %v428
    %v444 = vshrl.u32 1326507024, %v429
    %v445 = vor.u32 %v443, %v444
    %vm446 = vcmp.lt.s32.totalorder %v427, 1
    %vm447 = vcmp.lt.s32.totalorder %v427, 2
    %vm448 = vcmp.lt.s32.totalorder %v427, 3
    %vm449 = vcmp.lt.s32.totalorder %v427, 4
    %v450 = vsel %vm446, %v430, %v433
    %v451 = vsel %vm449, %v439, 2102212464
    %v452 = vsel %vm448, %v436, %v451
    %v453 = vsel %vm447, %v450, %v452
    %v454 = vsel %vm446, %v433, %v436
    %v455 = vsel %vm449, %v442, 920167782
    %v456 = vsel %vm448, %v439, %v455
    %v457 = vsel %vm447, %v454, %v456
    %v458 = vsel %vm446, %v436, %v439
    %v459 = vsel %vm449, %v445, 1326507024
    %v460 = vsel %vm448, %v442, %v459
    %v461 = vsel %vm447, %v458, %v460
    %v462 = vshll.u32 %v422, 8
    %v463 = vand.u32 %v462, 65535
    %v464 = vshrl.u32 %v462, 16
    %v465 = vand.u32 %v461, 65535
    %v466 = vshrl.u32 %v461, 16
    %v467 = vmul.u32 %v463, %v465
    %v468 = vmul.u32 %v463, %v466
    %v469 = vmul.u32 %v464, %v465
    %v470 = vmul.u32 %v464, %v466
    %v471 = vshll.u32 %v468, 16
    %v472 = vshrl.u32 %v468, 16
    %v473 = vshll.u32 %v469, 16
    %v474 = vshrl.u32 %v469, 16
    %vm475 = vc.u32 %v467, %v471
    %v476 = vsel %vm475, 1, 0
    %v477 = vadd.s32 %v467, %v471
    %v478 = vadd.s32 %v470, %v476
    %vm479 = vc.u32 %v477, %v473
    %v480 = vsel %vm479, 1, 0
    %v481 = vadd.s32 %v477, %v473
    %v482 = vadd.s32 %v478, %v480
    %v483 = vadd.s32 %v482, %v472
    %v484 = vadd.s32 %v483, %v474
    %v485 = vand.u32 %v462, 65535
    %v486 = vshrl.u32 %v462, 16
    %v487 = vand.u32 %v457, 65535
    %v488 = vshrl.u32 %v457, 16
    %v489 = vmul.u32 %v485, %v487
    %v490 = vmul.u32 %v485, %v488
    %v491 = vmul.u32 %v486, %v487
    %v492 = vmul.u32 %v486, %v488
    %v493 = vshll.u32 %v490, 16
    %v494 = vshrl.u32 %v490, 16
    %v495 = vshll.u32 %v491, 16
    %v496 = vshrl.u32 %v491, 16
    %vm497 = vc.u32 %v489, %v493
    %v498 = vsel %vm497, 1, 0
    %v499 = vadd.s32 %v489, %v493
    %v500 = vadd.s32 %v492, %v498
    %vm501 = vc.u32 %v499, %v495
    %v502 = vsel %vm501, 1, 0
    %v503 = vadd.s32 %v499, %v495
    %v504 = vadd.s32 %v500, %v502
    %v505 = vadd.s32 %v504, %v494
    %v506 = vadd.s32 %v505, %v496
    %v507 = vmul.u32 %v462, %v453
    %v508 = vadd.s32 %v484, %v503
    %vm509 = vc.u32 %v484, %v503
    %v510 = vadd.s32 %v506, 1
    %v511 = vsel %vm509, %v510, %v506
    %v512 = vadd.s32 %v507, %v511
    %v513 = vadd.s32 %v512, 536870912
    %v514 = vshrl.u32 %v513, 30
    %v515 = vshll.u32 %v514, 30
    %v516 = vsub.s32 %v512, %v515
    %vm517 = vcmp.lt.s32.totalorder %v516, 0
    %v518 = vsub.s32 0, %v516
    %v519 = vsel %vm517, %v518, %v516
    %v520 = vclz %v519
    %v521 = vsub.s32 %v520, 2
    %vm522 = vcmp.gt.s32.totalorder 0, %v521
    %v523 = vsel %vm522, 0, %v521
    %v524 = vsub.s32 32, %v523
    %v525 = vshll.u32 %v516, %v523
    %v526 = vshrl.u32 %v508, %v524
    %v527 = vor.u32 %v525, %v526
    %v528 = vsub.s32 4294967266, %v523
    %v529 = vadd.s32 %v528, 127
    %v530 = vshll.u32 %v529, 23
    %v531 = vor.u32 4788187, %v530
    %v532 = vand.u32 2147483647, %v531
    %v534 = vcvt.s32.f32 %v527
    %v535 = vmul.f32 %v534, %v532
    %v536 = vxor.u32 %v535, 2147483648
    %v537 = vsel %vm416, %v536, %v535
    %v538 = vsub.s32 4, %v514
    %v539 = vsel %vm416, %v538, %v514
    %v540 = vsel %vm415, %v413, %v537
    %v541 = vsel %vm415, 0, %v539
    %v542 = vmul.f32 %v540, %v540
    %v543 = vmul.f32 %v542, -0.001358992
    %v544 = vadd.f32 %v543, 0.041655596
    %v545 = vmul.f32 %v542, %v544
    %v546 = vadd.f32 %v545, -0.4999988
    %v547 = vmul.f32 %v542, %v546
    %v548 = vadd.f32 1.0, %v547
    %v549 = vmul.f32 %v540, %v540
    %v550 = vmul.f32 %v549, -0.00019511016
    %v551 = vadd.f32 %v550, 0.008332121
    %v552 = vmul.f32 %v549, %v551
    %v553 = vadd.f32 %v552, -0.16666654
    %v554 = vmul.f32 %v549, %v553
    %v555 = vadd.f32 %v554, 1.0
    %v556 = vmul.f32 %v555, %v540
    %vm557 = vweird.f32 %v413
    %v558 = vand.u32 %v541, 3
    %vm559 = vcmp.lt.s32.totalorder %v558, 2
    %vm560 = vcmp.eq.s32.totalorder %v558, 0
    %v561 = vxor.u32 %v556, 2147483648
    %v562 = vsel %vm560, %v548, %v561
    %vm563 = vcmp.eq.s32.totalorder %v558, 2
    %v564 = vxor.u32 %v548, 2147483648
    %v565 = vsel %vm563, %v564, %v556
    %v566 = vsel %vm559, %v562, %v565
    %v567 = vsel %vm557, nan, %v566
    %v568 = vpack.c.bf16 %v567, %v567
    %v569 = vld [vmem:[#allocation8] sm:$0xf]
    %v570 = vld [vmem:[#allocation8 + $0x4] sm:$0xf]
    %v571 = vld [vmem:[#allocation8 + $0x8] sm:$0xf]
    %v572 = vld [vmem:[#allocation8 + $0xc] sm:$0xf]
    %v573 = vld [vmem:[#allocation8 + $0x10] sm:$0xf]
    %v574 = vld [vmem:[#allocation8 + $0x14] sm:$0xf]
    %v575 = vld [vmem:[#allocation8 + $0x18] sm:$0xf]
    %v576 = vld [vmem:[#allocation8 + $0x1c] sm:$0xf]
    %v577 = vld [vmem:[%s6] sm:$0x1]
    %v579 = vperm.slane %v577, 0
    %v589 = vunpack.c.l.b16 %v569
    %v590 = vunpack.c.l.b16 %v570
    %v591 = vunpack.c.l.b16 %v571
    %v592 = vunpack.c.l.b16 %v572
    %v593 = vunpack.c.l.b16 %v573
    %v594 = vunpack.c.l.b16 %v574
    %v595 = vunpack.c.l.b16 %v575
    %v596 = vunpack.c.l.b16 %v576
    %v597 = vpack.c.b16 %v590, %v589
    %v598 = vpack.c.b16 %v592, %v591
    %v599 = vpack.c.b16 %v594, %v593
    %v600 = vpack.c.b16 %v596, %v595
    %v606 = vsel %vm161, %v568, 0
    %608 = vmatpush.bf16.msra.mxu0 0
    %609 = vmatpush.bf16.msra.mxu0 0
    %610 = vmatpush.bf16.msra.mxu0 0
    %611 = vmatpush.bf16.msra.mxu0 0
    %612 = vmatpush.bf16.msra.mxu0 %v600
    %613 = vmatpush.bf16.msra.mxu0 %v599
    %614 = vmatpush.bf16.msra.mxu0 %v598
    %615 = vmatpush.bf16.msra.mxu0 %v597
    %616 = vmatmul.bf16.gmra.mxu0 %v606
    %v617 = vpop.f32.mrf.mxu0
    %v618 = vadd.f32 %v579, %v617
    %v619 = vpop.f32.mrf.mxu0
    %620 = vdwg.mxu0
    %v621 = vmax.f32 %v618, 0.0
    %v622 = vmul.f32 %v183, %v621
    %v623 = vsel %vm161, %v622, 0.0
    %624 = vadd.xlane.f32.xlu0 %v623
    %v625 = vpop.xlane.xlu0 %624
    %vm626 = vcmask 15368
    %627 = vst.msk [vmem:[#allocation10] sm:$0xff] %vm626, %v625
    %628 = vset.pattern.permute.xlu0 18
    %629 = vperm.xlu0 %628, %v92
    %v630 = vpop.permute.xlu0 %629
    %v632 = vmul.f32 %v630, %v188
    %v633 = vand.u32 2147483647, %v632
    %vm634 = vcmp.le.f32.partialorder %v633, 0.7853982
    %vm635 = vcmp.lt.s32.totalorder %v632, 0
    %v636 = vand.u32 %v632, 2139095040
    %v637 = vshrl.u32 %v636, 23
    %v638 = vsub.s32 %v637, 127
    %v639 = vand.u32 2147483647, %v632
    %v640 = vand.u32 %v639, 8388607
    %v641 = vor.u32 %v640, 8388608
    %v642 = vsub.s32 0, %v641
    %v643 = vadd.s32 %v638, 1
    %vm644 = vcmp.gt.s32.totalorder %v643, 0
    %v645 = vsel %vm644, %v643, 0
    %v646 = vshrl.u32 %v645, 5
    %v647 = vand.u32 %v645, 31
    %v648 = vsub.s32 32, %v647
    %v649 = vshrl.u32 683565275, %v648
    %v650 = vshll.u32 683565275, %v647
    %v651 = vshrl.u32 2475754826, %v648
    %v652 = vor.u32 %v650, %v651
    %v653 = vshll.u32 2475754826, %v647
    %v654 = vshrl.u32 2131351028, %v648
    %v655 = vor.u32 %v653, %v654
    %v656 = vshll.u32 2131351028, %v647
    %v657 = vshrl.u32 2102212464, %v648
    %v658 = vor.u32 %v656, %v657
    %v659 = vshll.u32 2102212464, %v647
    %v660 = vshrl.u32 920167782, %v648
    %v661 = vor.u32 %v659, %v660
    %v662 = vshll.u32 920167782, %v647
    %v663 = vshrl.u32 1326507024, %v648
    %v664 = vor.u32 %v662, %v663
    %vm665 = vcmp.lt.s32.totalorder %v646, 1
    %vm666 = vcmp.lt.s32.totalorder %v646, 2
    %vm667 = vcmp.lt.s32.totalorder %v646, 3
    %vm668 = vcmp.lt.s32.totalorder %v646, 4
    %v669 = vsel %vm665, %v649, %v652
    %v670 = vsel %vm668, %v658, 2102212464
    %v671 = vsel %vm667, %v655, %v670
    %v672 = vsel %vm666, %v669, %v671
    %v673 = vsel %vm665, %v652, %v655
    %v674 = vsel %vm668, %v661, 920167782
    %v675 = vsel %vm667, %v658, %v674
    %v676 = vsel %vm666, %v673, %v675
    %v677 = vsel %vm665, %v655, %v658
    %v678 = vsel %vm668, %v664, 1326507024
    %v679 = vsel %vm667, %v661, %v678
    %v680 = vsel %vm666, %v677, %v679
    %v681 = vshll.u32 %v641, 8
    %v682 = vand.u32 %v681, 65535
    %v683 = vshrl.u32 %v681, 16
    %v684 = vand.u32 %v680, 65535
    %v685 = vshrl.u32 %v680, 16
    %v686 = vmul.u32 %v682, %v684
    %v687 = vmul.u32 %v682, %v685
    %v688 = vmul.u32 %v683, %v684
    %v689 = vmul.u32 %v683, %v685
    %v690 = vshll.u32 %v687, 16
    %v691 = vshrl.u32 %v687, 16
    %v692 = vshll.u32 %v688, 16
    %v693 = vshrl.u32 %v688, 16
    %vm694 = vc.u32 %v686, %v690
    %v695 = vsel %vm694, 1, 0
    %v696 = vadd.s32 %v686, %v690
    %v697 = vadd.s32 %v689, %v695
    %vm698 = vc.u32 %v696, %v692
    %v699 = vsel %vm698, 1, 0
    %v700 = vadd.s32 %v696, %v692
    %v701 = vadd.s32 %v697, %v699
    %v702 = vadd.s32 %v701, %v691
    %v703 = vadd.s32 %v702, %v693
    %v704 = vand.u32 %v681, 65535
    %v705 = vshrl.u32 %v681, 16
    %v706 = vand.u32 %v676, 65535
    %v707 = vshrl.u32 %v676, 16
    %v708 = vmul.u32 %v704, %v706
    %v709 = vmul.u32 %v704, %v707
    %v710 = vmul.u32 %v705, %v706
    %v711 = vmul.u32 %v705, %v707
    %v712 = vshll.u32 %v709, 16
    %v713 = vshrl.u32 %v709, 16
    %v714 = vshll.u32 %v710, 16
    %v715 = vshrl.u32 %v710, 16
    %vm716 = vc.u32 %v708, %v712
    %v717 = vsel %vm716, 1, 0
    %v718 = vadd.s32 %v708, %v712
    %v719 = vadd.s32 %v711, %v717
    %vm720 = vc.u32 %v718, %v714
    %v721 = vsel %vm720, 1, 0
    %v722 = vadd.s32 %v718, %v714
    %v723 = vadd.s32 %v719, %v721
    %v724 = vadd.s32 %v723, %v713
    %v725 = vadd.s32 %v724, %v715
    %v726 = vmul.u32 %v681, %v672
    %v727 = vadd.s32 %v703, %v722
    %vm728 = vc.u32 %v703, %v722
    %v729 = vadd.s32 %v725, 1
    %v730 = vsel %vm728, %v729, %v725
    %v731 = vadd.s32 %v726, %v730
    %v732 = vadd.s32 %v731, 536870912
    %v733 = vshrl.u32 %v732, 30
    %v734 = vshll.u32 %v733, 30
    %v735 = vsub.s32 %v731, %v734
    %vm736 = vcmp.lt.s32.totalorder %v735, 0
    %v737 = vsub.s32 0, %v735
    %v738 = vsel %vm736, %v737, %v735
    %v739 = vclz %v738
    %v740 = vsub.s32 %v739, 2
    %vm741 = vcmp.gt.s32.totalorder 0, %v740
    %v742 = vsel %vm741, 0, %v740
    %v743 = vsub.s32 32, %v742
    %v744 = vshll.u32 %v735, %v742
    %v745 = vshrl.u32 %v727, %v743
    %v746 = vor.u32 %v744, %v745
    %v747 = vsub.s32 4294967266, %v742
    %v748 = vadd.s32 %v747, 127
    %v749 = vshll.u32 %v748, 23
    %v750 = vor.u32 4788187, %v749
    %v751 = vand.u32 2147483647, %v750
    %v753 = vcvt.s32.f32 %v746
    %v754 = vmul.f32 %v753, %v751
    %v755 = vxor.u32 %v754, 2147483648
    %v756 = vsel %vm635, %v755, %v754
    %v757 = vsub.s32 4, %v733
    %v758 = vsel %vm635, %v757, %v733
    %v759 = vsel %vm634, %v632, %v756
    %v760 = vsel %vm634, 0, %v758
    %v761 = vmul.f32 %v759, %v759
    %v762 = vmul.f32 %v761, -0.001358992
    %v763 = vadd.f32 %v762, 0.041655596
    %v764 = vmul.f32 %v761, %v763
    %v765 = vadd.f32 %v764, -0.4999988
    %v766 = vmul.f32 %v761, %v765
    %v767 = vadd.f32 1.0, %v766
    %v768 = vmul.f32 %v759, %v759
    %v769 = vmul.f32 %v768, -0.00019511016
    %v770 = vadd.f32 %v769, 0.008332121
    %v771 = vmul.f32 %v768, %v770
    %v772 = vadd.f32 %v771, -0.16666654
    %v773 = vmul.f32 %v768, %v772
    %v774 = vadd.f32 %v773, 1.0
    %v775 = vmul.f32 %v774, %v759
    %vm776 = vweird.f32 %v632
    %v777 = vand.u32 %v760, 3
    %vm778 = vcmp.lt.s32.totalorder %v777, 2
    %vm779 = vcmp.eq.s32.totalorder %v777, 0
    %v780 = vxor.u32 %v775, 2147483648
    %v781 = vsel %vm779, %v767, %v780
    %vm782 = vcmp.eq.s32.totalorder %v777, 2
    %v783 = vxor.u32 %v767, 2147483648
    %v784 = vsel %vm782, %v783, %v775
    %v785 = vsel %vm778, %v781, %v784
    %v786 = vsel %vm776, nan, %v785
    %v787 = vpack.c.bf16 %v786, %v786
    %v788 = vld [vmem:[#allocation8] sm:$0xf]
    %v789 = vld [vmem:[#allocation8 + $0x4] sm:$0xf]
    %v790 = vld [vmem:[#allocation8 + $0x8] sm:$0xf]
    %v791 = vld [vmem:[#allocation8 + $0xc] sm:$0xf]
    %v792 = vld [vmem:[#allocation8 + $0x10] sm:$0xf]
    %v793 = vld [vmem:[#allocation8 + $0x14] sm:$0xf]
    %v794 = vld [vmem:[#allocation8 + $0x18] sm:$0xf]
    %v795 = vld [vmem:[#allocation8 + $0x1c] sm:$0xf]
    %v796 = vld [vmem:[%s6] sm:$0x1]
    %v798 = vperm.slane %v796, 0
    %v808 = vunpack.c.l.b16 %v788
    %v809 = vunpack.c.l.b16 %v789
    %v810 = vunpack.c.l.b16 %v790
    %v811 = vunpack.c.l.b16 %v791
    %v812 = vunpack.c.l.b16 %v792
    %v813 = vunpack.c.l.b16 %v793
    %v814 = vunpack.c.l.b16 %v794
    %v815 = vunpack.c.l.b16 %v795
    %v816 = vpack.c.b16 %v809, %v808
    %v817 = vpack.c.b16 %v811, %v810
    %v818 = vpack.c.b16 %v813, %v812
    %v819 = vpack.c.b16 %v815, %v814
    %v825 = vsel %vm161, %v787, 0
    %827 = vmatpush.bf16.msra.mxu0 0
    %828 = vmatpush.bf16.msra.mxu0 0
    %829 = vmatpush.bf16.msra.mxu0 0
    %830 = vmatpush.bf16.msra.mxu0 0
    %831 = vmatpush.bf16.msra.mxu0 %v819
    %832 = vmatpush.bf16.msra.mxu0 %v818
    %833 = vmatpush.bf16.msra.mxu0 %v817
    %834 = vmatpush.bf16.msra.mxu0 %v816
    %835 = vmatmul.bf16.gmra.mxu0 %v825
    %v836 = vpop.f32.mrf.mxu0
    %v837 = vadd.f32 %v798, %v836
    %v838 = vpop.f32.mrf.mxu0
    %839 = vdwg.mxu0
    %v840 = vmax.f32 %v837, 0.0
    %v841 = vmul.f32 %v183, %v840
    %v842 = vsel %vm161, %v841, 0.0
    %843 = vadd.xlane.f32.xlu0 %v842
    %v844 = vpop.xlane.xlu0 %843
    %vm845 = vcmask 23568
    %846 = vst.msk [vmem:[#allocation10] sm:$0xff] %vm845, %v844
    %847 = vset.pattern.permute.xlu0 19
    %848 = vperm.xlu0 %847, %v92
    %v849 = vpop.permute.xlu0 %848
    %v851 = vmul.f32 %v849, %v188
    %v852 = vand.u32 2147483647, %v851
    %vm853 = vcmp.le.f32.partialorder %v852, 0.7853982
    %vm854 = vcmp.lt.s32.totalorder %v851, 0
    %v855 = vand.u32 %v851, 2139095040
    %v856 = vshrl.u32 %v855, 23
    %v857 = vsub.s32 %v856, 127
    %v858 = vand.u32 2147483647, %v851
    %v859 = vand.u32 %v858, 8388607
    %v860 = vor.u32 %v859, 8388608
    %v861 = vsub.s32 0, %v860
    %v862 = vadd.s32 %v857, 1
    %vm863 = vcmp.gt.s32.totalorder %v862, 0
    %v864 = vsel %vm863, %v862, 0
    %v865 = vshrl.u32 %v864, 5
    %v866 = vand.u32 %v864, 31
    %v867 = vsub.s32 32, %v866
    %v868 = vshrl.u32 683565275, %v867
    %v869 = vshll.u32 683565275, %v866
    %v870 = vshrl.u32 2475754826, %v867
    %v871 = vor.u32 %v869, %v870
    %v872 = vshll.u32 2475754826, %v866
    %v873 = vshrl.u32 2131351028, %v867
    %v874 = vor.u32 %v872, %v873
    %v875 = vshll.u32 2131351028, %v866
    %v876 = vshrl.u32 2102212464, %v867
    %v877 = vor.u32 %v875, %v876
    %v878 = vshll.u32 2102212464, %v866
    %v879 = vshrl.u32 920167782, %v867
    %v880 = vor.u32 %v878, %v879
    %v881 = vshll.u32 920167782, %v866
    %v882 = vshrl.u32 1326507024, %v867
    %v883 = vor.u32 %v881, %v882
    %vm884 = vcmp.lt.s32.totalorder %v865, 1
    %vm885 = vcmp.lt.s32.totalorder %v865, 2
    %vm886 = vcmp.lt.s32.totalorder %v865, 3
    %vm887 = vcmp.lt.s32.totalorder %v865, 4
    %v888 = vsel %vm884, %v868, %v871
    %v889 = vsel %vm887, %v877, 2102212464
    %v890 = vsel %vm886, %v874, %v889
    %v891 = vsel %vm885, %v888, %v890
    %v892 = vsel %vm884, %v871, %v874
    %v893 = vsel %vm887, %v880, 920167782
    %v894 = vsel %vm886, %v877, %v893
    %v895 = vsel %vm885, %v892, %v894
    %v896 = vsel %vm884, %v874, %v877
    %v897 = vsel %vm887, %v883, 1326507024
    %v898 = vsel %vm886, %v880, %v897
    %v899 = vsel %vm885, %v896, %v898
    %v900 = vshll.u32 %v860, 8
    %v901 = vand.u32 %v900, 65535
    %v902 = vshrl.u32 %v900, 16
    %v903 = vand.u32 %v899, 65535
    %v904 = vshrl.u32 %v899, 16
    %v905 = vmul.u32 %v901, %v903
    %v906 = vmul.u32 %v901, %v904
    %v907 = vmul.u32 %v902, %v903
    %v908 = vmul.u32 %v902, %v904
    %v909 = vshll.u32 %v906, 16
    %v910 = vshrl.u32 %v906, 16
    %v911 = vshll.u32 %v907, 16
    %v912 = vshrl.u32 %v907, 16
    %vm913 = vc.u32 %v905, %v909
    %v914 = vsel %vm913, 1, 0
    %v915 = vadd.s32 %v905, %v909
    %v916 = vadd.s32 %v908, %v914
    %vm917 = vc.u32 %v915, %v911
    %v918 = vsel %vm917, 1, 0
    %v919 = vadd.s32 %v915, %v911
    %v920 = vadd.s32 %v916, %v918
    %v921 = vadd.s32 %v920, %v910
    %v922 = vadd.s32 %v921, %v912
    %v923 = vand.u32 %v900, 65535
    %v924 = vshrl.u32 %v900, 16
    %v925 = vand.u32 %v895, 65535
    %v926 = vshrl.u32 %v895, 16
    %v927 = vmul.u32 %v923, %v925
    %v928 = vmul.u32 %v923, %v926
    %v929 = vmul.u32 %v924, %v925
    %v930 = vmul.u32 %v924, %v926
    %v931 = vshll.u32 %v928, 16
    %v932 = vshrl.u32 %v928, 16
    %v933 = vshll.u32 %v929, 16
    %v934 = vshrl.u32 %v929, 16
    %vm935 = vc.u32 %v927, %v931
    %v936 = vsel %vm935, 1, 0
    %v937 = vadd.s32 %v927, %v931
    %v938 = vadd.s32 %v930, %v936
    %vm939 = vc.u32 %v937, %v933
    %v940 = vsel %vm939, 1, 0
    %v941 = vadd.s32 %v937, %v933
    %v942 = vadd.s32 %v938, %v940
    %v943 = vadd.s32 %v942, %v932
    %v944 = vadd.s32 %v943, %v934
    %v945 = vmul.u32 %v900, %v891
    %v946 = vadd.s32 %v922, %v941
    %vm947 = vc.u32 %v922, %v941
    %v948 = vadd.s32 %v944, 1
    %v949 = vsel %vm947, %v948, %v944
    %v950 = vadd.s32 %v945, %v949
    %v951 = vadd.s32 %v950, 536870912
    %v952 = vshrl.u32 %v951, 30
    %v953 = vshll.u32 %v952, 30
    %v954 = vsub.s32 %v950, %v953
    %vm955 = vcmp.lt.s32.totalorder %v954, 0
    %v956 = vsub.s32 0, %v954
    %v957 = vsel %vm955, %v956, %v954
    %v958 = vclz %v957
    %v959 = vsub.s32 %v958, 2
    %vm960 = vcmp.gt.s32.totalorder 0, %v959
    %v961 = vsel %vm960, 0, %v959
    %v962 = vsub.s32 32, %v961
    %v963 = vshll.u32 %v954, %v961
    %v964 = vshrl.u32 %v946, %v962
    %v965 = vor.u32 %v963, %v964
    %v966 = vsub.s32 4294967266, %v961
    %v967 = vadd.s32 %v966, 127
    %v968 = vshll.u32 %v967, 23
    %v969 = vor.u32 4788187, %v968
    %v970 = vand.u32 2147483647, %v969
    %v972 = vcvt.s32.f32 %v965
    %v973 = vmul.f32 %v972, %v970
    %v974 = vxor.u32 %v973, 2147483648
    %v975 = vsel %vm854, %v974, %v973
    %v976 = vsub.s32 4, %v952
    %v977 = vsel %vm854, %v976, %v952
    %v978 = vsel %vm853, %v851, %v975
    %v979 = vsel %vm853, 0, %v977
    %v980 = vmul.f32 %v978, %v978
    %v981 = vmul.f32 %v980, -0.001358992
    %v982 = vadd.f32 %v981, 0.041655596
    %v983 = vmul.f32 %v980, %v982
    %v984 = vadd.f32 %v983, -0.4999988
    %v985 = vmul.f32 %v980, %v984
    %v986 = vadd.f32 1.0, %v985
    %v987 = vmul.f32 %v978, %v978
    %v988 = vmul.f32 %v987, -0.00019511016
    %v989 = vadd.f32 %v988, 0.008332121
    %v990 = vmul.f32 %v987, %v989
    %v991 = vadd.f32 %v990, -0.16666654
    %v992 = vmul.f32 %v987, %v991
    %v993 = vadd.f32 %v992, 1.0
    %v994 = vmul.f32 %v993, %v978
    %vm995 = vweird.f32 %v851
    %v996 = vand.u32 %v979, 3
    %vm997 = vcmp.lt.s32.totalorder %v996, 2
    %vm998 = vcmp.eq.s32.totalorder %v996, 0
    %v999 = vxor.u32 %v994, 2147483648
    %v1000 = vsel %vm998, %v986, %v999
    %vm1001 = vcmp.eq.s32.totalorder %v996, 2
    %v1002 = vxor.u32 %v986, 2147483648
    %v1003 = vsel %vm1001, %v1002, %v994
    %v1004 = vsel %vm997, %v1000, %v1003
    %v1005 = vsel %vm995, nan, %v1004
    %v1006 = vpack.c.bf16 %v1005, %v1005
    %v1007 = vld [vmem:[#allocation8] sm:$0xf]
    %v1008 = vld [vmem:[#allocation8 + $0x4] sm:$0xf]
    %v1009 = vld [vmem:[#allocation8 + $0x8] sm:$0xf]
    %v1010 = vld [vmem:[#allocation8 + $0xc] sm:$0xf]
    %v1011 = vld [vmem:[#allocation8 + $0x10] sm:$0xf]
    %v1012 = vld [vmem:[#allocation8 + $0x14] sm:$0xf]
    %v1013 = vld [vmem:[#allocation8 + $0x18] sm:$0xf]
    %v1014 = vld [vmem:[#allocation8 + $0x1c] sm:$0xf]
    %v1015 = vld [vmem:[%s6] sm:$0x1]
    %v1017 = vperm.slane %v1015, 0
    %v1027 = vunpack.c.l.b16 %v1007
    %v1028 = vunpack.c.l.b16 %v1008
    %v1029 = vunpack.c.l.b16 %v1009
    %v1030 = vunpack.c.l.b16 %v1010
    %v1031 = vunpack.c.l.b16 %v1011
    %v1032 = vunpack.c.l.b16 %v1012
    %v1033 = vunpack.c.l.b16 %v1013
    %v1034 = vunpack.c.l.b16 %v1014
    %v1035 = vpack.c.b16 %v1028, %v1027
    %v1036 = vpack.c.b16 %v1030, %v1029
    %v1037 = vpack.c.b16 %v1032, %v1031
    %v1038 = vpack.c.b16 %v1034, %v1033
    %v1044 = vsel %vm161, %v1006, 0
    %1046 = vmatpush.bf16.msra.mxu0 0
    %1047 = vmatpush.bf16.msra.mxu0 0
    %1048 = vmatpush.bf16.msra.mxu0 0
    %1049 = vmatpush.bf16.msra.mxu0 0
    %1050 = vmatpush.bf16.msra.mxu0 %v1038
    %1051 = vmatpush.bf16.msra.mxu0 %v1037
    %1052 = vmatpush.bf16.msra.mxu0 %v1036
    %1053 = vmatpush.bf16.msra.mxu0 %v1035
    %1054 = vmatmul.bf16.gmra.mxu0 %v1044
    %v1055 = vpop.f32.mrf.mxu0
    %v1056 = vadd.f32 %v1017, %v1055
    %v1057 = vpop.f32.mrf.mxu0
    %1058 = vdwg.mxu0
    %v1059 = vmax.f32 %v1056, 0.0
    %v1060 = vmul.f32 %v183, %v1059
    %v1061 = vsel %vm161, %v1060, 0.0
    %1062 = vadd.xlane.f32.xlu0 %v1061
    %v1063 = vpop.xlane.xlu0 %1062
    %vm1064 = vcmask 31768
    %1065 = vst.msk [vmem:[#allocation10] sm:$0xff] %vm1064, %v1063
    %1066 = vset.pattern.permute.xlu0 20
    %1067 = vperm.xlu0 %1066, %v92
    %v1068 = vpop.permute.xlu0 %1067
    %v1070 = vmul.f32 %v1068, %v188
    %v1071 = vand.u32 2147483647, %v1070
    %vm1072 = vcmp.le.f32.partialorder %v1071, 0.7853982
    %vm1073 = vcmp.lt.s32.totalorder %v1070, 0
    %v1074 = vand.u32 %v1070, 2139095040
    %v1075 = vshrl.u32 %v1074, 23
    %v1076 = vsub.s32 %v1075, 127
    %v1077 = vand.u32 2147483647, %v1070
    %v1078 = vand.u32 %v1077, 8388607
    %v1079 = vor.u32 %v1078, 8388608
    %v1080 = vsub.s32 0, %v1079
    %v1081 = vadd.s32 %v1076, 1
    %vm1082 = vcmp.gt.s32.totalorder %v1081, 0
    %v1083 = vsel %vm1082, %v1081, 0
    %v1084 = vshrl.u32 %v1083, 5
    %v1085 = vand.u32 %v1083, 31
    %v1086 = vsub.s32 32, %v1085
    %v1087 = vshrl.u32 683565275, %v1086
    %v1088 = vshll.u32 683565275, %v1085
    %v1089 = vshrl.u32 2475754826, %v1086
    %v1090 = vor.u32 %v1088, %v1089
    %v1091 = vshll.u32 2475754826, %v1085
    %v1092 = vshrl.u32 2131351028, %v1086
    %v1093 = vor.u32 %v1091, %v1092
    %v1094 = vshll.u32 2131351028, %v1085
    %v1095 = vshrl.u32 2102212464, %v1086
    %v1096 = vor.u32 %v1094, %v1095
    %v1097 = vshll.u32 2102212464, %v1085
    %v1098 = vshrl.u32 920167782, %v1086
    %v1099 = vor.u32 %v1097, %v1098
    %v1100 = vshll.u32 920167782, %v1085
    %v1101 = vshrl.u32 1326507024, %v1086
    %v1102 = vor.u32 %v1100, %v1101
    %vm1103 = vcmp.lt.s32.totalorder %v1084, 1
    %vm1104 = vcmp.lt.s32.totalorder %v1084, 2
    %vm1105 = vcmp.lt.s32.totalorder %v1084, 3
    %vm1106 = vcmp.lt.s32.totalorder %v1084, 4
    %v1107 = vsel %vm1103, %v1087, %v1090
    %v1108 = vsel %vm1106, %v1096, 2102212464
    %v1109 = vsel %vm1105, %v1093, %v1108
    %v1110 = vsel %vm1104, %v1107, %v1109
    %v1111 = vsel %vm1103, %v1090, %v1093
    %v1112 = vsel %vm1106, %v1099, 920167782
    %v1113 = vsel %vm1105, %v1096, %v1112
    %v1114 = vsel %vm1104, %v1111, %v1113
    %v1115 = vsel %vm1103, %v1093, %v1096
    %v1116 = vsel %vm1106, %v1102, 1326507024
    %v1117 = vsel %vm1105, %v1099, %v1116
    %v1118 = vsel %vm1104, %v1115, %v1117
    %v1119 = vshll.u32 %v1079, 8
    %v1120 = vand.u32 %v1119, 65535
    %v1121 = vshrl.u32 %v1119, 16
    %v1122 = vand.u32 %v1118, 65535
    %v1123 = vshrl.u32 %v1118, 16
    %v1124 = vmul.u32 %v1120, %v1122
    %v1125 = vmul.u32 %v1120, %v1123
    %v1126 = vmul.u32 %v1121, %v1122
    %v1127 = vmul.u32 %v1121, %v1123
    %v1128 = vshll.u32 %v1125, 16
    %v1129 = vshrl.u32 %v1125, 16
    %v1130 = vshll.u32 %v1126, 16
    %v1131 = vshrl.u32 %v1126, 16
    %vm1132 = vc.u32 %v1124, %v1128
    %v1133 = vsel %vm1132, 1, 0
    %v1134 = vadd.s32 %v1124, %v1128
    %v1135 = vadd.s32 %v1127, %v1133
    %vm1136 = vc.u32 %v1134, %v1130
    %v1137 = vsel %vm1136, 1, 0
    %v1138 = vadd.s32 %v1134, %v1130
    %v1139 = vadd.s32 %v1135, %v1137
    %v1140 = vadd.s32 %v1139, %v1129
    %v1141 = vadd.s32 %v1140, %v1131
    %v1142 = vand.u32 %v1119, 65535
    %v1143 = vshrl.u32 %v1119, 16
    %v1144 = vand.u32 %v1114, 65535
    %v1145 = vshrl.u32 %v1114, 16
    %v1146 = vmul.u32 %v1142, %v1144
    %v1147 = vmul.u32 %v1142, %v1145
    %v1148 = vmul.u32 %v1143, %v1144
    %v1149 = vmul.u32 %v1143, %v1145
    %v1150 = vshll.u32 %v1147, 16
    %v1151 = vshrl.u32 %v1147, 16
    %v1152 = vshll.u32 %v1148, 16
    %v1153 = vshrl.u32 %v1148, 16
    %vm1154 = vc.u32 %v1146, %v1150
    %v1155 = vsel %vm1154, 1, 0
    %v1156 = vadd.s32 %v1146, %v1150
    %v1157 = vadd.s32 %v1149, %v1155
    %vm1158 = vc.u32 %v1156, %v1152
    %v1159 = vsel %vm1158, 1, 0
    %v1160 = vadd.s32 %v1156, %v1152
    %v1161 = vadd.s32 %v1157, %v1159
    %v1162 = vadd.s32 %v1161, %v1151
    %v1163 = vadd.s32 %v1162, %v1153
    %v1164 = vmul.u32 %v1119, %v1110
    %v1165 = vadd.s32 %v1141, %v1160
    %vm1166 = vc.u32 %v1141, %v1160
    %v1167 = vadd.s32 %v1163, 1
    %v1168 = vsel %vm1166, %v1167, %v1163
    %v1169 = vadd.s32 %v1164, %v1168
    %v1170 = vadd.s32 %v1169, 536870912
    %v1171 = vshrl.u32 %v1170, 30
    %v1172 = vshll.u32 %v1171, 30
    %v1173 = vsub.s32 %v1169, %v1172
    %vm1174 = vcmp.lt.s32.totalorder %v1173, 0
    %v1175 = vsub.s32 0, %v1173
    %v1176 = vsel %vm1174, %v1175, %v1173
    %v1177 = vclz %v1176
    %v1178 = vsub.s32 %v1177, 2
    %vm1179 = vcmp.gt.s32.totalorder 0, %v1178
    %v1180 = vsel %vm1179, 0, %v1178
    %v1181 = vsub.s32 32, %v1180
    %v1182 = vshll.u32 %v1173, %v1180
    %v1183 = vshrl.u32 %v1165, %v1181
    %v1184 = vor.u32 %v1182, %v1183
    %v1185 = vsub.s32 4294967266, %v1180
    %v1186 = vadd.s32 %v1185, 127
    %v1187 = vshll.u32 %v1186, 23
    %v1188 = vor.u32 4788187, %v1187
    %v1189 = vand.u32 2147483647, %v1188
    %v1191 = vcvt.s32.f32 %v1184
    %v1192 = vmul.f32 %v1191, %v1189
    %v1193 = vxor.u32 %v1192, 2147483648
    %v1194 = vsel %vm1073, %v1193, %v1192
    %v1195 = vsub.s32 4, %v1171
    %v1196 = vsel %vm1073, %v1195, %v1171
    %v1197 = vsel %vm1072, %v1070, %v1194
    %v1198 = vsel %vm1072, 0, %v1196
    %v1199 = vmul.f32 %v1197, %v1197
    %v1200 = vmul.f32 %v1199, -0.001358992
    %v1201 = vadd.f32 %v1200, 0.041655596
    %v1202 = vmul.f32 %v1199, %v1201
    %v1203 = vadd.f32 %v1202, -0.4999988
    %v1204 = vmul.f32 %v1199, %v1203
    %v1205 = vadd.f32 1.0, %v1204
    %v1206 = vmul.f32 %v1197, %v1197
    %v1207 = vmul.f32 %v1206, -0.00019511016
    %v1208 = vadd.f32 %v1207, 0.008332121
    %v1209 = vmul.f32 %v1206, %v1208
    %v1210 = vadd.f32 %v1209, -0.16666654
    %v1211 = vmul.f32 %v1206, %v1210
    %v1212 = vadd.f32 %v1211, 1.0
    %v1213 = vmul.f32 %v1212, %v1197
    %vm1214 = vweird.f32 %v1070
    %v1215 = vand.u32 %v1198, 3
    %vm1216 = vcmp.lt.s32.totalorder %v1215, 2
    %vm1217 = vcmp.eq.s32.totalorder %v1215, 0
    %v1218 = vxor.u32 %v1213, 2147483648
    %v1219 = vsel %vm1217, %v1205, %v1218
    %vm1220 = vcmp.eq.s32.totalorder %v1215, 2
    %v1221 = vxor.u32 %v1205, 2147483648
    %v1222 = vsel %vm1220, %v1221, %v1213
    %v1223 = vsel %vm1216, %v1219, %v1222
    %v1224 = vsel %vm1214, nan, %v1223
    %v1225 = vpack.c.bf16 %v1224, %v1224
    %v1226 = vld [vmem:[#allocation8] sm:$0xf]
    %v1227 = vld [vmem:[#allocation8 + $0x4] sm:$0xf]
    %v1228 = vld [vmem:[#allocation8 + $0x8] sm:$0xf]
    %v1229 = vld [vmem:[#allocation8 + $0xc] sm:$0xf]
    %v1230 = vld [vmem:[#allocation8 + $0x10] sm:$0xf]
    %v1231 = vld [vmem:[#allocation8 + $0x14] sm:$0xf]
    %v1232 = vld [vmem:[#allocation8 + $0x18] sm:$0xf]
    %v1233 = vld [vmem:[#allocation8 + $0x1c] sm:$0xf]
    %v1234 = vld [vmem:[%s6] sm:$0x1]
    %v1236 = vperm.slane %v1234, 0
    %v1246 = vunpack.c.l.b16 %v1226
    %v1247 = vunpack.c.l.b16 %v1227
    %v1248 = vunpack.c.l.b16 %v1228
    %v1249 = vunpack.c.l.b16 %v1229
    %v1250 = vunpack.c.l.b16 %v1230
    %v1251 = vunpack.c.l.b16 %v1231
    %v1252 = vunpack.c.l.b16 %v1232
    %v1253 = vunpack.c.l.b16 %v1233
    %v1254 = vpack.c.b16 %v1247, %v1246
    %v1255 = vpack.c.b16 %v1249, %v1248
    %v1256 = vpack.c.b16 %v1251, %v1250
    %v1257 = vpack.c.b16 %v1253, %v1252
    %v1263 = vsel %vm161, %v1225, 0
    %1265 = vmatpush.bf16.msra.mxu0 0
    %1266 = vmatpush.bf16.msra.mxu0 0
    %1267 = vmatpush.bf16.msra.mxu0 0
    %1268 = vmatpush.bf16.msra.mxu0 0
    %1269 = vmatpush.bf16.msra.mxu0 %v1257
    %1270 = vmatpush.bf16.msra.mxu0 %v1256
    %1271 = vmatpush.bf16.msra.mxu0 %v1255
    %1272 = vmatpush.bf16.msra.mxu0 %v1254
    %1273 = vmatmul.bf16.gmra.mxu0 %v1263
    %v1274 = vpop.f32.mrf.mxu0
    %v1275 = vadd.f32 %v1236, %v1274
    %v1276 = vpop.f32.mrf.mxu0
    %1277 = vdwg.mxu0
    %v1278 = vmax.f32 %v1275, 0.0
    %v1279 = vmul.f32 %v183, %v1278
    %v1280 = vsel %vm161, %v1279, 0.0
    %1281 = vadd.xlane.f32.xlu0 %v1280
    %v1282 = vpop.xlane.xlu0 %1281
    %vm1283 = vcmask 39968
    %1284 = vst.msk [vmem:[#allocation10] sm:$0xff] %vm1283, %v1282
    %1285 = vset.pattern.permute.xlu0 21
    %1286 = vperm.xlu0 %1285, %v92
    %v1287 = vpop.permute.xlu0 %1286
    %v1289 = vmul.f32 %v1287, %v188
    %v1290 = vand.u32 2147483647, %v1289
    %vm1291 = vcmp.le.f32.partialorder %v1290, 0.7853982
    %vm1292 = vcmp.lt.s32.totalorder %v1289, 0
    %v1293 = vand.u32 %v1289, 2139095040
    %v1294 = vshrl.u32 %v1293, 23
    %v1295 = vsub.s32 %v1294, 127
    %v1296 = vand.u32 2147483647, %v1289
    %v1297 = vand.u32 %v1296, 8388607
    %v1298 = vor.u32 %v1297, 8388608
    %v1299 = vsub.s32 0, %v1298
    %v1300 = vadd.s32 %v1295, 1
    %vm1301 = vcmp.gt.s32.totalorder %v1300, 0
    %v1302 = vsel %vm1301, %v1300, 0
    %v1303 = vshrl.u32 %v1302, 5
    %v1304 = vand.u32 %v1302, 31
    %v1305 = vsub.s32 32, %v1304
    %v1306 = vshrl.u32 683565275, %v1305
    %v1307 = vshll.u32 683565275, %v1304
    %v1308 = vshrl.u32 2475754826, %v1305
    %v1309 = vor.u32 %v1307, %v1308
    %v1310 = vshll.u32 2475754826, %v1304
    %v1311 = vshrl.u32 2131351028, %v1305
    %v1312 = vor.u32 %v1310, %v1311
    %v1313 = vshll.u32 2131351028, %v1304
    %v1314 = vshrl.u32 2102212464, %v1305
    %v1315 = vor.u32 %v1313, %v1314
    %v1316 = vshll.u32 2102212464, %v1304
    %v1317 = vshrl.u32 920167782, %v1305
    %v1318 = vor.u32 %v1316, %v1317
    %v1319 = vshll.u32 920167782, %v1304
    %v1320 = vshrl.u32 1326507024, %v1305
    %v1321 = vor.u32 %v1319, %v1320
    %vm1322 = vcmp.lt.s32.totalorder %v1303, 1
    %vm1323 = vcmp.lt.s32.totalorder %v1303, 2
    %vm1324 = vcmp.lt.s32.totalorder %v1303, 3
    %vm1325 = vcmp.lt.s32.totalorder %v1303, 4
    %v1326 = vsel %vm1322, %v1306, %v1309
    %v1327 = vsel %vm1325, %v1315, 2102212464
    %v1328 = vsel %vm1324, %v1312, %v1327
    %v1329 = vsel %vm1323, %v1326, %v1328
    %v1330 = vsel %vm1322, %v1309, %v1312
    %v1331 = vsel %vm1325, %v1318, 920167782
    %v1332 = vsel %vm1324, %v1315, %v1331
    %v1333 = vsel %vm1323, %v1330, %v1332
    %v1334 = vsel %vm1322, %v1312, %v1315
    %v1335 = vsel %vm1325, %v1321, 1326507024
    %v1336 = vsel %vm1324, %v1318, %v1335
    %v1337 = vsel %vm1323, %v1334, %v1336
    %v1338 = vshll.u32 %v1298, 8
    %v1339 = vand.u32 %v1338, 65535
    %v1340 = vshrl.u32 %v1338, 16
    %v1341 = vand.u32 %v1337, 65535
    %v1342 = vshrl.u32 %v1337, 16
    %v1343 = vmul.u32 %v1339, %v1341
    %v1344 = vmul.u32 %v1339, %v1342
    %v1345 = vmul.u32 %v1340, %v1341
    %v1346 = vmul.u32 %v1340, %v1342
    %v1347 = vshll.u32 %v1344, 16
    %v1348 = vshrl.u32 %v1344, 16
    %v1349 = vshll.u32 %v1345, 16
    %v1350 = vshrl.u32 %v1345, 16
    %vm1351 = vc.u32 %v1343, %v1347
    %v1352 = vsel %vm1351, 1, 0
    %v1353 = vadd.s32 %v1343, %v1347
    %v1354 = vadd.s32 %v1346, %v1352
    %vm1355 = vc.u32 %v1353, %v1349
    %v1356 = vsel %vm1355, 1, 0
    %v1357 = vadd.s32 %v1353, %v1349
    %v1358 = vadd.s32 %v1354, %v1356
    %v1359 = vadd.s32 %v1358, %v1348
    %v1360 = vadd.s32 %v1359, %v1350
    %v1361 = vand.u32 %v1338, 65535
    %v1362 = vshrl.u32 %v1338, 16
    %v1363 = vand.u32 %v1333, 65535
    %v1364 = vshrl.u32 %v1333, 16
    %v1365 = vmul.u32 %v1361, %v1363
    %v1366 = vmul.u32 %v1361, %v1364
    %v1367 = vmul.u32 %v1362, %v1363
    %v1368 = vmul.u32 %v1362, %v1364
    %v1369 = vshll.u32 %v1366, 16
    %v1370 = vshrl.u32 %v1366, 16
    %v1371 = vshll.u32 %v1367, 16
    %v1372 = vshrl.u32 %v1367, 16
    %vm1373 = vc.u32 %v1365, %v1369
    %v1374 = vsel %vm1373, 1, 0
    %v1375 = vadd.s32 %v1365, %v1369
    %v1376 = vadd.s32 %v1368, %v1374
    %vm1377 = vc.u32 %v1375, %v1371
    %v1378 = vsel %vm1377, 1, 0
    %v1379 = vadd.s32 %v1375, %v1371
    %v1380 = vadd.s32 %v1376, %v1378
    %v1381 = vadd.s32 %v1380, %v1370
    %v1382 = vadd.s32 %v1381, %v1372
    %v1383 = vmul.u32 %v1338, %v1329
    %v1384 = vadd.s32 %v1360, %v1379
    %vm1385 = vc.u32 %v1360, %v1379
    %v1386 = vadd.s32 %v1382, 1
    %v1387 = vsel %vm1385, %v1386, %v1382
    %v1388 = vadd.s32 %v1383, %v1387
    %v1389 = vadd.s32 %v1388, 536870912
    %v1390 = vshrl.u32 %v1389, 30
    %v1391 = vshll.u32 %v1390, 30
    %v1392 = vsub.s32 %v1388, %v1391
    %vm1393 = vcmp.lt.s32.totalorder %v1392, 0
    %v1394 = vsub.s32 0, %v1392
    %v1395 = vsel %vm1393, %v1394, %v1392
    %v1396 = vclz %v1395
    %v1397 = vsub.s32 %v1396, 2
    %vm1398 = vcmp.gt.s32.totalorder 0, %v1397
    %v1399 = vsel %vm1398, 0, %v1397
    %v1400 = vsub.s32 32, %v1399
    %v1401 = vshll.u32 %v1392, %v1399
    %v1402 = vshrl.u32 %v1384, %v1400
    %v1403 = vor.u32 %v1401, %v1402
    %v1404 = vsub.s32 4294967266, %v1399
    %v1405 = vadd.s32 %v1404, 127
    %v1406 = vshll.u32 %v1405, 23
    %v1407 = vor.u32 4788187, %v1406
    %v1408 = vand.u32 2147483647, %v1407
    %v1410 = vcvt.s32.f32 %v1403
    %v1411 = vmul.f32 %v1410, %v1408
    %v1412 = vxor.u32 %v1411, 2147483648
    %v1413 = vsel %vm1292, %v1412, %v1411
    %v1414 = vsub.s32 4, %v1390
    %v1415 = vsel %vm1292, %v1414, %v1390
    %v1416 = vsel %vm1291, %v1289, %v1413
    %v1417 = vsel %vm1291, 0, %v1415
    %v1418 = vmul.f32 %v1416, %v1416
    %v1419 = vmul.f32 %v1418, -0.001358992
    %v1420 = vadd.f32 %v1419, 0.041655596
    %v1421 = vmul.f32 %v1418, %v1420
    %v1422 = vadd.f32 %v1421, -0.4999988
    %v1423 = vmul.f32 %v1418, %v1422
    %v1424 = vadd.f32 1.0, %v1423
    %v1425 = vmul.f32 %v1416, %v1416
    %v1426 = vmul.f32 %v1425, -0.00019511016
    %v1427 = vadd.f32 %v1426, 0.008332121
    %v1428 = vmul.f32 %v1425, %v1427
    %v1429 = vadd.f32 %v1428, -0.16666654
    %v1430 = vmul.f32 %v1425, %v1429
    %v1431 = vadd.f32 %v1430, 1.0
    %v1432 = vmul.f32 %v1431, %v1416
    %vm1433 = vweird.f32 %v1289
    %v1434 = vand.u32 %v1417, 3
    %vm1435 = vcmp.lt.s32.totalorder %v1434, 2
    %vm1436 = vcmp.eq.s32.totalorder %v1434, 0
    %v1437 = vxor.u32 %v1432, 2147483648
    %v1438 = vsel %vm1436, %v1424, %v1437
    %vm1439 = vcmp.eq.s32.totalorder %v1434, 2
    %v1440 = vxor.u32 %v1424, 2147483648
    %v1441 = vsel %vm1439, %v1440, %v1432
    %v1442 = vsel %vm1435, %v1438, %v1441
    %v1443 = vsel %vm1433, nan, %v1442
    %v1444 = vpack.c.bf16 %v1443, %v1443
    %v1445 = vld [vmem:[#allocation8] sm:$0xf]
    %v1446 = vld [vmem:[#allocation8 + $0x4] sm:$0xf]
    %v1447 = vld [vmem:[#allocation8 + $0x8] sm:$0xf]
    %v1448 = vld [vmem:[#allocation8 + $0xc] sm:$0xf]
    %v1449 = vld [vmem:[#allocation8 + $0x10] sm:$0xf]
    %v1450 = vld [vmem:[#allocation8 + $0x14] sm:$0xf]
    %v1451 = vld [vmem:[#allocation8 + $0x18] sm:$0xf]
    %v1452 = vld [vmem:[#allocation8 + $0x1c] sm:$0xf]
    %v1453 = vld [vmem:[%s6] sm:$0x1]
    %v1455 = vperm.slane %v1453, 0
    %v1465 = vunpack.c.l.b16 %v1445
    %v1466 = vunpack.c.l.b16 %v1446
    %v1467 = vunpack.c.l.b16 %v1447
    %v1468 = vunpack.c.l.b16 %v1448
    %v1469 = vunpack.c.l.b16 %v1449
    %v1470 = vunpack.c.l.b16 %v1450
    %v1471 = vunpack.c.l.b16 %v1451
    %v1472 = vunpack.c.l.b16 %v1452
    %v1473 = vpack.c.b16 %v1466, %v1465
    %v1474 = vpack.c.b16 %v1468, %v1467
    %v1475 = vpack.c.b16 %v1470, %v1469
    %v1476 = vpack.c.b16 %v1472, %v1471
    %v1482 = vsel %vm161, %v1444, 0
    %1484 = vmatpush.bf16.msra.mxu0 0
    %1485 = vmatpush.bf16.msra.mxu0 0
    %1486 = vmatpush.bf16.msra.mxu0 0
    %1487 = vmatpush.bf16.msra.mxu0 0
    %1488 = vmatpush.bf16.msra.mxu0 %v1476
    %1489 = vmatpush.bf16.msra.mxu0 %v1475
    %1490 = vmatpush.bf16.msra.mxu0 %v1474
    %1491 = vmatpush.bf16.msra.mxu0 %v1473
    %1492 = vmatmul.bf16.gmra.mxu0 %v1482
    %v1493 = vpop.f32.mrf.mxu0
    %v1494 = vadd.f32 %v1455, %v1493
    %v1495 = vpop.f32.mrf.mxu0
    %1496 = vdwg.mxu0
    %v1497 = vmax.f32 %v1494, 0.0
    %v1498 = vmul.f32 %v183, %v1497
    %v1499 = vsel %vm161, %v1498, 0.0
    %1500 = vadd.xlane.f32.xlu0 %v1499
    %v1501 = vpop.xlane.xlu0 %1500
    %vm1502 = vcmask 48168
    %1503 = vst.msk [vmem:[#allocation10] sm:$0xff] %vm1502, %v1501
    %1504 = vset.pattern.permute.xlu0 22
    %1505 = vperm.xlu0 %1504, %v92
    %v1506 = vpop.permute.xlu0 %1505
    %v1508 = vmul.f32 %v1506, %v188
    %v1509 = vand.u32 2147483647, %v1508
    %vm1510 = vcmp.le.f32.partialorder %v1509, 0.7853982
    %vm1511 = vcmp.lt.s32.totalorder %v1508, 0
    %v1512 = vand.u32 %v1508, 2139095040
    %v1513 = vshrl.u32 %v1512, 23
    %v1514 = vsub.s32 %v1513, 127
    %v1515 = vand.u32 2147483647, %v1508
    %v1516 = vand.u32 %v1515, 8388607
    %v1517 = vor.u32 %v1516, 8388608
    %v1518 = vsub.s32 0, %v1517
    %v1519 = vadd.s32 %v1514, 1
    %vm1520 = vcmp.gt.s32.totalorder %v1519, 0
    %v1521 = vsel %vm1520, %v1519, 0
    %v1522 = vshrl.u32 %v1521, 5
    %v1523 = vand.u32 %v1521, 31
    %v1524 = vsub.s32 32, %v1523
    %v1525 = vshrl.u32 683565275, %v1524
    %v1526 = vshll.u32 683565275, %v1523
    %v1527 = vshrl.u32 2475754826, %v1524
    %v1528 = vor.u32 %v1526, %v1527
    %v1529 = vshll.u32 2475754826, %v1523
    %v1530 = vshrl.u32 2131351028, %v1524
    %v1531 = vor.u32 %v1529, %v1530
    %v1532 = vshll.u32 2131351028, %v1523
    %v1533 = vshrl.u32 2102212464, %v1524
    %v1534 = vor.u32 %v1532, %v1533
    %v1535 = vshll.u32 2102212464, %v1523
    %v1536 = vshrl.u32 920167782, %v1524
    %v1537 = vor.u32 %v1535, %v1536
    %v1538 = vshll.u32 920167782, %v1523
    %v1539 = vshrl.u32 1326507024, %v1524
    %v1540 = vor.u32 %v1538, %v1539
    %vm1541 = vcmp.lt.s32.totalorder %v1522, 1
    %vm1542 = vcmp.lt.s32.totalorder %v1522, 2
    %vm1543 = vcmp.lt.s32.totalorder %v1522, 3
    %vm1544 = vcmp.lt.s32.totalorder %v1522, 4
    %v1545 = vsel %vm1541, %v1525, %v1528
    %v1546 = vsel %vm1544, %v1534, 2102212464
    %v1547 = vsel %vm1543, %v1531, %v1546
    %v1548 = vsel %vm1542, %v1545, %v1547
    %v1549 = vsel %vm1541, %v1528, %v1531
    %v1550 = vsel %vm1544, %v1537, 920167782
    %v1551 = vsel %vm1543, %v1534, %v1550
    %v1552 = vsel %vm1542, %v1549, %v1551
    %v1553 = vsel %vm1541, %v1531, %v1534
    %v1554 = vsel %vm1544, %v1540, 1326507024
    %v1555 = vsel %vm1543, %v1537, %v1554
    %v1556 = vsel %vm1542, %v1553, %v1555
    %v1557 = vshll.u32 %v1517, 8
    %v1558 = vand.u32 %v1557, 65535
    %v1559 = vshrl.u32 %v1557, 16
    %v1560 = vand.u32 %v1556, 65535
    %v1561 = vshrl.u32 %v1556, 16
    %v1562 = vmul.u32 %v1558, %v1560
    %v1563 = vmul.u32 %v1558, %v1561
    %v1564 = vmul.u32 %v1559, %v1560
    %v1565 = vmul.u32 %v1559, %v1561
    %v1566 = vshll.u32 %v1563, 16
    %v1567 = vshrl.u32 %v1563, 16
    %v1568 = vshll.u32 %v1564, 16
    %v1569 = vshrl.u32 %v1564, 16
    %vm1570 = vc.u32 %v1562, %v1566
    %v1571 = vsel %vm1570, 1, 0
    %v1572 = vadd.s32 %v1562, %v1566
    %v1573 = vadd.s32 %v1565, %v1571
    %vm1574 = vc.u32 %v1572, %v1568
    %v1575 = vsel %vm1574, 1, 0
    %v1576 = vadd.s32 %v1572, %v1568
    %v1577 = vadd.s32 %v1573, %v1575
    %v1578 = vadd.s32 %v1577, %v1567
    %v1579 = vadd.s32 %v1578, %v1569
    %v1580 = vand.u32 %v1557, 65535
    %v1581 = vshrl.u32 %v1557, 16
    %v1582 = vand.u32 %v1552, 65535
    %v1583 = vshrl.u32 %v1552, 16
    %v1584 = vmul.u32 %v1580, %v1582
    %v1585 = vmul.u32 %v1580, %v1583
    %v1586 = vmul.u32 %v1581, %v1582
    %v1587 = vmul.u32 %v1581, %v1583
    %v1588 = vshll.u32 %v1585, 16
    %v1589 = vshrl.u32 %v1585, 16
    %v1590 = vshll.u32 %v1586, 16
    %v1591 = vshrl.u32 %v1586, 16
    %vm1592 = vc.u32 %v1584, %v1588
    %v1593 = vsel %vm1592, 1, 0
    %v1594 = vadd.s32 %v1584, %v1588
    %v1595 = vadd.s32 %v1587, %v1593
    %vm1596 = vc.u32 %v1594, %v1590
    %v1597 = vsel %vm1596, 1, 0
    %v1598 = vadd.s32 %v1594, %v1590
    %v1599 = vadd.s32 %v1595, %v1597
    %v1600 = vadd.s32 %v1599, %v1589
    %v1601 = vadd.s32 %v1600, %v1591
    %v1602 = vmul.u32 %v1557, %v1548
    %v1603 = vadd.s32 %v1579, %v1598
    %vm1604 = vc.u32 %v1579, %v1598
    %v1605 = vadd.s32 %v1601, 1
    %v1606 = vsel %vm1604, %v1605, %v1601
    %v1607 = vadd.s32 %v1602, %v1606
    %v1608 = vadd.s32 %v1607, 536870912
    %v1609 = vshrl.u32 %v1608, 30
    %v1610 = vshll.u32 %v1609, 30
    %v1611 = vsub.s32 %v1607, %v1610
    %vm1612 = vcmp.lt.s32.totalorder %v1611, 0
    %v1613 = vsub.s32 0, %v1611
    %v1614 = vsel %vm1612, %v1613, %v1611
    %v1615 = vclz %v1614
    %v1616 = vsub.s32 %v1615, 2
    %vm1617 = vcmp.gt.s32.totalorder 0, %v1616
    %v1618 = vsel %vm1617, 0, %v1616
    %v1619 = vsub.s32 32, %v1618
    %v1620 = vshll.u32 %v1611, %v1618
    %v1621 = vshrl.u32 %v1603, %v1619
    %v1622 = vor.u32 %v1620, %v1621
    %v1623 = vsub.s32 4294967266, %v1618
    %v1624 = vadd.s32 %v1623, 127
    %v1625 = vshll.u32 %v1624, 23
    %v1626 = vor.u32 4788187, %v1625
    %v1627 = vand.u32 2147483647, %v1626
    %v1629 = vcvt.s32.f32 %v1622
    %v1630 = vmul.f32 %v1629, %v1627
    %v1631 = vxor.u32 %v1630, 2147483648
    %v1632 = vsel %vm1511, %v1631, %v1630
    %v1633 = vsub.s32 4, %v1609
    %v1634 = vsel %vm1511, %v1633, %v1609
    %v1635 = vsel %vm1510, %v1508, %v1632
    %v1636 = vsel %vm1510, 0, %v1634
    %v1637 = vmul.f32 %v1635, %v1635
    %v1638 = vmul.f32 %v1637, -0.001358992
    %v1639 = vadd.f32 %v1638, 0.041655596
    %v1640 = vmul.f32 %v1637, %v1639
    %v1641 = vadd.f32 %v1640, -0.4999988
    %v1642 = vmul.f32 %v1637, %v1641
    %v1643 = vadd.f32 1.0, %v1642
    %v1644 = vmul.f32 %v1635, %v1635
    %v1645 = vmul.f32 %v1644, -0.00019511016
    %v1646 = vadd.f32 %v1645, 0.008332121
    %v1647 = vmul.f32 %v1644, %v1646
    %v1648 = vadd.f32 %v1647, -0.16666654
    %v1649 = vmul.f32 %v1644, %v1648
    %v1650 = vadd.f32 %v1649, 1.0
    %v1651 = vmul.f32 %v1650, %v1635
    %vm1652 = vweird.f32 %v1508
    %v1653 = vand.u32 %v1636, 3
    %vm1654 = vcmp.lt.s32.totalorder %v1653, 2
    %vm1655 = vcmp.eq.s32.totalorder %v1653, 0
    %v1656 = vxor.u32 %v1651, 2147483648
    %v1657 = vsel %vm1655, %v1643, %v1656
    %vm1658 = vcmp.eq.s32.totalorder %v1653, 2
    %v1659 = vxor.u32 %v1643, 2147483648
    %v1660 = vsel %vm1658, %v1659, %v1651
    %v1661 = vsel %vm1654, %v1657, %v1660
    %v1662 = vsel %vm1652, nan, %v1661
    %v1663 = vpack.c.bf16 %v1662, %v1662
    %v1664 = vld [vmem:[#allocation8] sm:$0xf]
    %v1665 = vld [vmem:[#allocation8 + $0x4] sm:$0xf]
    %v1666 = vld [vmem:[#allocation8 + $0x8] sm:$0xf]
    %v1667 = vld [vmem:[#allocation8 + $0xc] sm:$0xf]
    %v1668 = vld [vmem:[#allocation8 + $0x10] sm:$0xf]
    %v1669 = vld [vmem:[#allocation8 + $0x14] sm:$0xf]
    %v1670 = vld [vmem:[#allocation8 + $0x18] sm:$0xf]
    %v1671 = vld [vmem:[#allocation8 + $0x1c] sm:$0xf]
    %v1672 = vld [vmem:[%s6] sm:$0x1]
    %v1674 = vperm.slane %v1672, 0
    %v1684 = vunpack.c.l.b16 %v1664
    %v1685 = vunpack.c.l.b16 %v1665
    %v1686 = vunpack.c.l.b16 %v1666
    %v1687 = vunpack.c.l.b16 %v1667
    %v1688 = vunpack.c.l.b16 %v1668
    %v1689 = vunpack.c.l.b16 %v1669
    %v1690 = vunpack.c.l.b16 %v1670
    %v1691 = vunpack.c.l.b16 %v1671
    %v1692 = vpack.c.b16 %v1685, %v1684
    %v1693 = vpack.c.b16 %v1687, %v1686
    %v1694 = vpack.c.b16 %v1689, %v1688
    %v1695 = vpack.c.b16 %v1691, %v1690
    %v1701 = vsel %vm161, %v1663, 0
    %1703 = vmatpush.bf16.msra.mxu0 0
    %1704 = vmatpush.bf16.msra.mxu0 0
    %1705 = vmatpush.bf16.msra.mxu0 0
    %1706 = vmatpush.bf16.msra.mxu0 0
    %1707 = vmatpush.bf16.msra.mxu0 %v1695
    %1708 = vmatpush.bf16.msra.mxu0 %v1694
    %1709 = vmatpush.bf16.msra.mxu0 %v1693
    %1710 = vmatpush.bf16.msra.mxu0 %v1692
    %1711 = vmatmul.bf16.gmra.mxu0 %v1701
    %v1712 = vpop.f32.mrf.mxu0
    %v1713 = vadd.f32 %v1674, %v1712
    %v1714 = vpop.f32.mrf.mxu0
    %1715 = vdwg.mxu0
    %v1716 = vmax.f32 %v1713, 0.0
    %v1717 = vmul.f32 %v183, %v1716
    %v1718 = vsel %vm161, %v1717, 0.0
    %1719 = vadd.xlane.f32.xlu0 %v1718
    %v1720 = vpop.xlane.xlu0 %1719
    %vm1721 = vcmask 56368
    %1722 = vst.msk [vmem:[#allocation10] sm:$0xff] %vm1721, %v1720
    %1723 = vset.pattern.permute.xlu0 23
    %1724 = vperm.xlu0 %1723, %v92
    %v1725 = vpop.permute.xlu0 %1724
    %v1727 = vmul.f32 %v1725, %v188
    %v1728 = vand.u32 2147483647, %v1727
    %vm1729 = vcmp.le.f32.partialorder %v1728, 0.7853982
    %vm1730 = vcmp.lt.s32.totalorder %v1727, 0
    %v1731 = vand.u32 %v1727, 2139095040
    %v1732 = vshrl.u32 %v1731, 23
    %v1733 = vsub.s32 %v1732, 127
    %v1734 = vand.u32 2147483647, %v1727
    %v1735 = vand.u32 %v1734, 8388607
    %v1736 = vor.u32 %v1735, 8388608
    %v1737 = vsub.s32 0, %v1736
    %v1738 = vadd.s32 %v1733, 1
    %vm1739 = vcmp.gt.s32.totalorder %v1738, 0
    %v1740 = vsel %vm1739, %v1738, 0
    %v1741 = vshrl.u32 %v1740, 5
    %v1742 = vand.u32 %v1740, 31
    %v1743 = vsub.s32 32, %v1742
    %v1744 = vshrl.u32 683565275, %v1743
    %v1745 = vshll.u32 683565275, %v1742
    %v1746 = vshrl.u32 2475754826, %v1743
    %v1747 = vor.u32 %v1745, %v1746
    %v1748 = vshll.u32 2475754826, %v1742
    %v1749 = vshrl.u32 2131351028, %v1743
    %v1750 = vor.u32 %v1748, %v1749
    %v1751 = vshll.u32 2131351028, %v1742
    %v1752 = vshrl.u32 2102212464, %v1743
    %v1753 = vor.u32 %v1751, %v1752
    %v1754 = vshll.u32 2102212464, %v1742
    %v1755 = vshrl.u32 920167782, %v1743
    %v1756 = vor.u32 %v1754, %v1755
    %v1757 = vshll.u32 920167782, %v1742
    %v1758 = vshrl.u32 1326507024, %v1743
    %v1759 = vor.u32 %v1757, %v1758
    %vm1760 = vcmp.lt.s32.totalorder %v1741, 1
    %vm1761 = vcmp.lt.s32.totalorder %v1741, 2
    %vm1762 = vcmp.lt.s32.totalorder %v1741, 3
    %vm1763 = vcmp.lt.s32.totalorder %v1741, 4
    %v1764 = vsel %vm1760, %v1744, %v1747
    %v1765 = vsel %vm1763, %v1753, 2102212464
    %v1766 = vsel %vm1762, %v1750, %v1765
    %v1767 = vsel %vm1761, %v1764, %v1766
    %v1768 = vsel %vm1760, %v1747, %v1750
    %v1769 = vsel %vm1763, %v1756, 920167782
    %v1770 = vsel %vm1762, %v1753, %v1769
    %v1771 = vsel %vm1761, %v1768, %v1770
    %v1772 = vsel %vm1760, %v1750, %v1753
    %v1773 = vsel %vm1763, %v1759, 1326507024
    %v1774 = vsel %vm1762, %v1756, %v1773
    %v1775 = vsel %vm1761, %v1772, %v1774
    %v1776 = vshll.u32 %v1736, 8
    %v1777 = vand.u32 %v1776, 65535
    %v1778 = vshrl.u32 %v1776, 16
    %v1779 = vand.u32 %v1775, 65535
    %v1780 = vshrl.u32 %v1775, 16
    %v1781 = vmul.u32 %v1777, %v1779
    %v1782 = vmul.u32 %v1777, %v1780
    %v1783 = vmul.u32 %v1778, %v1779
    %v1784 = vmul.u32 %v1778, %v1780
    %v1785 = vshll.u32 %v1782, 16
    %v1786 = vshrl.u32 %v1782, 16
    %v1787 = vshll.u32 %v1783, 16
    %v1788 = vshrl.u32 %v1783, 16
    %vm1789 = vc.u32 %v1781, %v1785
    %v1790 = vsel %vm1789, 1, 0
    %v1791 = vadd.s32 %v1781, %v1785
    %v1792 = vadd.s32 %v1784, %v1790
    %vm1793 = vc.u32 %v1791, %v1787
    %v1794 = vsel %vm1793, 1, 0
    %v1795 = vadd.s32 %v1791, %v1787
    %v1796 = vadd.s32 %v1792, %v1794
    %v1797 = vadd.s32 %v1796, %v1786
    %v1798 = vadd.s32 %v1797, %v1788
    %v1799 = vand.u32 %v1776, 65535
    %v1800 = vshrl.u32 %v1776, 16
    %v1801 = vand.u32 %v1771, 65535
    %v1802 = vshrl.u32 %v1771, 16
    %v1803 = vmul.u32 %v1799, %v1801
    %v1804 = vmul.u32 %v1799, %v1802
    %v1805 = vmul.u32 %v1800, %v1801
    %v1806 = vmul.u32 %v1800, %v1802
    %v1807 = vshll.u32 %v1804, 16
    %v1808 = vshrl.u32 %v1804, 16
    %v1809 = vshll.u32 %v1805, 16
    %v1810 = vshrl.u32 %v1805, 16
    %vm1811 = vc.u32 %v1803, %v1807
    %v1812 = vsel %vm1811, 1, 0
    %v1813 = vadd.s32 %v1803, %v1807
    %v1814 = vadd.s32 %v1806, %v1812
    %vm1815 = vc.u32 %v1813, %v1809
    %v1816 = vsel %vm1815, 1, 0
    %v1817 = vadd.s32 %v1813, %v1809
    %v1818 = vadd.s32 %v1814, %v1816
    %v1819 = vadd.s32 %v1818, %v1808
    %v1820 = vadd.s32 %v1819, %v1810
    %v1821 = vmul.u32 %v1776, %v1767
    %v1822 = vadd.s32 %v1798, %v1817
    %vm1823 = vc.u32 %v1798, %v1817
    %v1824 = vadd.s32 %v1820, 1
    %v1825 = vsel %vm1823, %v1824, %v1820
    %v1826 = vadd.s32 %v1821, %v1825
    %v1827 = vadd.s32 %v1826, 536870912
    %v1828 = vshrl.u32 %v1827, 30
    %v1829 = vshll.u32 %v1828, 30
    %v1830 = vsub.s32 %v1826, %v1829
    %vm1831 = vcmp.lt.s32.totalorder %v1830, 0
    %v1832 = vsub.s32 0, %v1830
    %v1833 = vsel %vm1831, %v1832, %v1830
    %v1834 = vclz %v1833
    %v1835 = vsub.s32 %v1834, 2
    %vm1836 = vcmp.gt.s32.totalorder 0, %v1835
    %v1837 = vsel %vm1836, 0, %v1835
    %v1838 = vsub.s32 32, %v1837
    %v1839 = vshll.u32 %v1830, %v1837
    %v1840 = vshrl.u32 %v1822, %v1838
    %v1841 = vor.u32 %v1839, %v1840
    %v1842 = vsub.s32 4294967266, %v1837
    %v1843 = vadd.s32 %v1842, 127
    %v1844 = vshll.u32 %v1843, 23
    %v1845 = vor.u32 4788187, %v1844
    %v1846 = vand.u32 2147483647, %v1845
    %v1848 = vcvt.s32.f32 %v1841
    %v1849 = vmul.f32 %v1848, %v1846
    %v1850 = vxor.u32 %v1849, 2147483648
    %v1851 = vsel %vm1730, %v1850, %v1849
    %v1852 = vsub.s32 4, %v1828
    %v1853 = vsel %vm1730, %v1852, %v1828
    %v1854 = vsel %vm1729, %v1727, %v1851
    %v1855 = vsel %vm1729, 0, %v1853
    %v1856 = vmul.f32 %v1854, %v1854
    %v1857 = vmul.f32 %v1856, -0.001358992
    %v1858 = vadd.f32 %v1857, 0.041655596
    %v1859 = vmul.f32 %v1856, %v1858
    %v1860 = vadd.f32 %v1859, -0.4999988
    %v1861 = vmul.f32 %v1856, %v1860
    %v1862 = vadd.f32 1.0, %v1861
    %v1863 = vmul.f32 %v1854, %v1854
    %v1864 = vmul.f32 %v1863, -0.00019511016
    %v1865 = vadd.f32 %v1864, 0.008332121
    %v1866 = vmul.f32 %v1863, %v1865
    %v1867 = vadd.f32 %v1866, -0.16666654
    %v1868 = vmul.f32 %v1863, %v1867
    %v1869 = vadd.f32 %v1868, 1.0
    %v1870 = vmul.f32 %v1869, %v1854
    %vm1871 = vweird.f32 %v1727
    %v1872 = vand.u32 %v1855, 3
    %vm1873 = vcmp.lt.s32.totalorder %v1872, 2
    %vm1874 = vcmp.eq.s32.totalorder %v1872, 0
    %v1875 = vxor.u32 %v1870, 2147483648
    %v1876 = vsel %vm1874, %v1862, %v1875
    %vm1877 = vcmp.eq.s32.totalorder %v1872, 2
    %v1878 = vxor.u32 %v1862, 2147483648
    %v1879 = vsel %vm1877, %v1878, %v1870
    %v1880 = vsel %vm1873, %v1876, %v1879
    %v1881 = vsel %vm1871, nan, %v1880
    %v1882 = vpack.c.bf16 %v1881, %v1881
    %v1883 = vld [vmem:[#allocation8] sm:$0xf]
    %v1884 = vld [vmem:[#allocation8 + $0x4] sm:$0xf]
    %v1885 = vld [vmem:[#allocation8 + $0x8] sm:$0xf]
    %v1886 = vld [vmem:[#allocation8 + $0xc] sm:$0xf]
    %v1887 = vld [vmem:[#allocation8 + $0x10] sm:$0xf]
    %v1888 = vld [vmem:[#allocation8 + $0x14] sm:$0xf]
    %v1889 = vld [vmem:[#allocation8 + $0x18] sm:$0xf]
    %v1890 = vld [vmem:[#allocation8 + $0x1c] sm:$0xf]
    %v1891 = vld [vmem:[%s6] sm:$0x1]
    %v1893 = vperm.slane %v1891, 0
    %v1903 = vunpack.c.l.b16 %v1883
    %v1904 = vunpack.c.l.b16 %v1884
    %v1905 = vunpack.c.l.b16 %v1885
    %v1906 = vunpack.c.l.b16 %v1886
    %v1907 = vunpack.c.l.b16 %v1887
    %v1908 = vunpack.c.l.b16 %v1888
    %v1909 = vunpack.c.l.b16 %v1889
    %v1910 = vunpack.c.l.b16 %v1890
    %v1911 = vpack.c.b16 %v1904, %v1903
    %v1912 = vpack.c.b16 %v1906, %v1905
    %v1913 = vpack.c.b16 %v1908, %v1907
    %v1914 = vpack.c.b16 %v1910, %v1909
    %v1920 = vsel %vm161, %v1882, 0
    %1922 = vmatpush.bf16.msra.mxu0 0
    %1923 = vmatpush.bf16.msra.mxu0 0
    %1924 = vmatpush.bf16.msra.mxu0 0
    %1925 = vmatpush.bf16.msra.mxu0 0
    %1926 = vmatpush.bf16.msra.mxu0 %v1914
    %1927 = vmatpush.bf16.msra.mxu0 %v1913
    %1928 = vmatpush.bf16.msra.mxu0 %v1912
    %1929 = vmatpush.bf16.msra.mxu0 %v1911
    %1930 = vmatmul.bf16.gmra.mxu0 %v1920
    %v1931 = vpop.f32.mrf.mxu0
    %v1932 = vadd.f32 %v1893, %v1931
    %v1933 = vpop.f32.mrf.mxu0
    %1934 = vdwg.mxu0
    %v1935 = vmax.f32 %v1932, 0.0
    %v1936 = vmul.f32 %v183, %v1935
    %v1937 = vsel %vm161, %v1936, 0.0
    %1938 = vadd.xlane.f32.xlu0 %v1937
    %v1939 = vpop.xlane.xlu0 %1938
    %vm1940 = vcmask 64568
    %1941 = vst.msk [vmem:[#allocation10] sm:$0xff] %vm1940, %v1939
    // Predicated region
    $region50: #{tpu_custom_call.1} parent=1 // pred_check
      _
    $region51: #{tpu_custom_call.1} parent=1 // pred_check_branch
      %1943 = sbr.rel (0) target = $region53
    $region52: #{tpu_custom_call.1} parent=1 // pred_region
      %1945 = vsyncadd [#allocation4], 0
      %s1947 = sshll.u32 [#allocation10], 4
      %s1948 = int_to_ptr.vmem [resolvable:$true] %s1947
      %s1949 = sshll.u32 %s8, 4
      %s1950 = int_to_ptr.hbm [resolvable:$true] %s1949
      %1952 = dma.vmem_to_hbm [thread:$0]  %s1948, 128, %s1950, [#allocation4]
    $region53: #{tpu_custom_call.1} parent=1 // pred_fallthru
      _
    // Predicated region
    $region54: #{tpu_custom_call.1} parent=1 // pred_check
      _
    $region55: #{tpu_custom_call.1} parent=1 // pred_check_branch
      %1954 = sbr.rel (0) target = $region57
    $region56: #{tpu_custom_call.1} parent=1 // pred_region
      %1956 = dma.done [#allocation4], 128
    $region57: #{tpu_custom_call.1} parent=1 // pred_fallthru
      _
    %1957 = vsyncpa [#allocation3], 1
    %1958 = vsyncpa [#allocation6], 1
    %1959 = vsyncpa [#allocation9], 1
    %1960 = vsyncpa [#allocation4], 1

</llo_original>
